<compile_context>
chip_gen: v7x
topology: tpu7x:2x2x1
jax: 0.10.0
libtpu: 0.0.40
codegen_flags: <defaults>
</compile_context>

<pallas_src>
import math

import jax
import jax.numpy as jnp
from jax import lax
from jax.experimental import pallas as pl
from jax.experimental.pallas import tpu as pltpu

_INV_SQRT2 = 0.7071067811865476
_NEG_INF = -1e30
_HIGHEST = jax.lax.Precision.HIGHEST


def _round_up(x, m):
    return ((x + m - 1) // m) * m


def _gelu_exact(x):
    # PyTorch nn.GELU() default: exact erf formulation.
    # TODO(synk): switch to the tanh/EUP formulation if profiling shows the VALU
    # slot (not the MXU) is the binding unit at small D/H.
    return 0.5 * x * (1.0 + lax.erf(x * jnp.float32(_INV_SQRT2)))


def _vmem_capacity_bytes():
    try:
        return int(pltpu.get_tpu_info().vmem_capacity_bytes)
    except Exception:
        return 64 << 20  # conservative default (v7x per-TensorCore VMEM)


def _choose_tk(Dp, EHp, tm, in_bytes, cap_bytes, max_tk=None):
    """Largest 128-aligned hidden-chunk size whose VMEM footprint fits."""
    budget = int(0.65 * cap_bytes)
    fixed = (2 * tm * Dp * in_bytes        # x tile (double-buffered)
             + Dp * Dp * in_bytes          # gate weight (single-buffered)
             + 2 * tm * Dp * 4             # resident output / accumulator
             + 2 * tm * Dp * 4             # gate + elementwise temporaries
             + 4 * Dp * 4)                 # bias blocks
    per_tk = (2 * Dp * in_bytes            # W1 chunk column (double-buffered)
              + 2 * Dp * in_bytes          # W2 chunk row (double-buffered)
              + 2 * tm * 4                 # hidden-slab temporaries
              + 2 * 4)                     # b1 chunk
    avail = budget - fixed
    tk_max = max(128, (avail // per_tk) // 128 * 128) if avail > 0 else 128
    if max_tk is not None:
        tk_max = max(128, min(tk_max, _round_up(int(max_tk), 128)))
    tk_max = min(tk_max, EHp)
    # Balance chunk sizes: same number of grid steps, minimal zero padding.
    kc = -(-EHp // tk_max)
    tk = _round_up(-(-EHp // kc), 128)
    return tk, kc * tk


def moe_ffn_gating_kernel(x_ref, wg_ref, bg_ref, w1_ref, b1_ref, w2_ref, b2_ref, o_ref):
    k = pl.program_id(1)

    @pl.when(k == 0)
    def _init():
        o_ref[...] = jnp.zeros_like(o_ref)

    x = x_ref[...]

    # Expert hidden chunk: (tm, tk) slab -> accumulate the second matmul into
    # the VMEM-resident f32 output block.
    h = jnp.dot(x, w1_ref[...], precision=_HIGHEST,
                preferred_element_type=jnp.float32) + b1_ref[...]
    h = _gelu_exact(h)
    o_ref[...] += jnp.dot(h.astype(w2_ref.dtype), w2_ref[...], precision=_HIGHEST,
                          preferred_element_type=jnp.float32)

    @pl.when(k == pl.num_programs(1) - 1)
    def _finalize():
        # Gate computed once per token tile (cheap vs. the expert stream).
        # Padded columns carry a -1e30 bias, so softmax assigns them exactly 0.
        g = jnp.dot(x, wg_ref[...], precision=_HIGHEST,
                    preferred_element_type=jnp.float32) + bg_ref[...]
        g = jnp.exp(g - jnp.max(g, axis=-1, keepdims=True))
        g = g * pl.reciprocal(jnp.sum(g, axis=-1, keepdims=True), approx=False)
        o_ref[...] = (g * (o_ref[...] + b2_ref[...])).astype(o_ref.dtype)


def prepare_moe_ffn_gating_params(wg, bg, w1, b1, w2, b2, *, tm=512,
                                  dtype=jnp.float32, max_tk=None):
    """One-time (hoisted) fusion / padding of the module parameters.

    wg: (D, D)  bg: (1, D)  w1: (E, D, H)  b1: (E, 1, H)  w2: (E, H, D)  b2: (E, 1, D)
    Experts are fused along the hidden axis: W1 -> (D, E*H), W2 -> (E*H, D),
    and b2 is summed over experts (the module sums expert outputs before gating).
    Call once and reuse the result across forward passes.
    """
    D = wg.shape[0]
    E, _, H = w1.shape
    EH = E * H
    Dp = _round_up(D, 128)
    EHp = _round_up(EH, 128)
    dtype = jnp.dtype(dtype)
    in_bytes = dtype.itemsize
    cap = _vmem_capacity_bytes()
    tk, EHpp = _choose_tk(Dp, EHp, tm, in_bytes, cap, max_tk=max_tk)

    wg_p = jnp.zeros((Dp, Dp), dtype).at[:D, :D].set(wg.astype(dtype))
    bg_p = jnp.full((1, Dp), _NEG_INF, jnp.float32).at[:, :D].set(bg.astype(jnp.float32))
    w1_p = jnp.zeros((Dp, EHpp), dtype).at[:D, :EH].set(
        jnp.transpose(w1, (1, 0, 2)).reshape(D, EH).astype(dtype))
    b1_p = jnp.zeros((1, EHpp), jnp.float32).at[:, :EH].set(
        b1.reshape(1, EH).astype(jnp.float32))
    w2_p = jnp.zeros((EHpp, Dp), dtype).at[:EH, :D].set(
        w2.reshape(EH, D).astype(dtype))
    b2_p = jnp.zeros((1, Dp), jnp.float32).at[:, :D].set(
        b2.sum(axis=0).astype(jnp.float32))

    return {
        "wg": wg_p, "bg": bg_p, "w1": w1_p, "b1": b1_p, "w2": w2_p, "b2": b2_p,
        "dim": D, "Dp": Dp, "EH": EH, "EHpp": EHpp, "tk": tk,
        "dtype": dtype, "nominal_tm": tm, "vmem_cap": cap,
    }
    # TODO(synk): if product tolerance allows, call this with dtype=jnp.bfloat16
    # to feed the MXU native bf16 operands (GELU/softmax/accumulation stay f32).


def moe_ffn_gating(x, params, *, tm=None):
    """x: (B, N, D) f32; params: output of prepare_moe_ffn_gating_params."""
    B, N, D = x.shape
    assert D == params["dim"]
    Dp, EHpp, tk = params["Dp"], params["EHpp"], params["tk"]
    dtype = params["dtype"]
    in_bytes = dtype.itemsize
    T = B * N

    if tm is None:
        tm = params["nominal_tm"]
    tm = max(8, min(int(tm), _round_up(T, 8)))
    # Prefer >= 2 token tiles so the leading "parallel" axis can shard across
    # the two TensorCores on v7x.
    if T > 8 and _round_up(T, tm) // tm < 2:
        tm = max(8, _round_up(-(-T // 2), 8))
    Tp = _round_up(T, tm)
    n_tiles = Tp // tm
    kc = EHpp // tk

    xf = jnp.zeros((Tp, Dp), dtype).at[:T, :D].set(x.reshape(T, D).astype(dtype))

    # VMEM footprint of the chosen tiling (+ headroom for in-kernel temporaries).
    vmem_bytes = (
        2 * tm * Dp * in_bytes                 # x tile (double-buffered)
        + Dp * Dp * in_bytes                   # gate weight (single-buffered)
        + 2 * (Dp * tk + tk * Dp) * in_bytes   # W1/W2 chunks (double-buffered)
        + (2 * tk + 3 * Dp) * 4                # bias blocks
        + 2 * tm * Dp * 4                      # resident output / accumulator
        + 2 * tm * tk * 4 + 2 * tm * Dp * 4    # hidden-slab / gate temporaries
    )
    vmem_limit = int(min(params["vmem_cap"], max(32 << 20, vmem_bytes + (4 << 20))))

    # Advisory cost: expert weights are re-streamed once per token tile; the
    # gate weight and x/out move exactly once.
    flops = 2 * Tp * Dp * Dp + 4 * Tp * Dp * EHpp
    transcendentals = Tp * (EHpp + Dp)
    bytes_accessed = (
        Tp * Dp * (in_bytes + 4)
        + Dp * Dp * in_bytes + 3 * Dp * 4
        + n_tiles * (2 * Dp * EHpp * in_bytes + EHpp * 4)
    )

    def invariant(shape):
        # Grid-invariant blocks: fetched once, single-buffered to save VMEM.
        return pl.BlockSpec(shape, lambda i, k: (0, 0),
                            pipeline_mode=pl.Buffered(1))

    out = pl.pallas_call(
        moe_ffn_gating_kernel,
        out_shape=jax.ShapeDtypeStruct((Tp, Dp), jnp.float32),
        grid=(n_tiles, kc),
        in_specs=[
            pl.BlockSpec((tm, Dp), lambda i, k: (i, 0)),     # x token tile
            invariant((Dp, Dp)),                             # gate weight (resident)
            invariant((1, Dp)),                              # gate bias (padded: -1e30)
            pl.BlockSpec((Dp, tk), lambda i, k: (0, k)),     # W1 chunk (streamed)
            pl.BlockSpec((1, tk), lambda i, k: (0, k)),      # b1 chunk
            pl.BlockSpec((tk, Dp), lambda i, k: (k, 0)),     # W2 chunk (streamed)
            invariant((1, Dp)),                              # sum_e b2_e
        ],
        out_specs=pl.BlockSpec((tm, Dp), lambda i, k: (i, 0)),
        compiler_params=pltpu.CompilerParams(
            dimension_semantics=("parallel", "arbitrary"),
            vmem_limit_bytes=vmem_limit),
        cost_estimate=pl.CostEstimate(flops=flops,
                                      transcendentals=transcendentals,
                                      bytes_accessed=bytes_accessed),
    )(xf, params["wg"], params["bg"], params["w1"], params["b1"],
      params["w2"], params["b2"])

    return out[:T, :D].reshape(B, N, D)


def _reference(x, wg, bg, w1, b1, w2, b2):
    # Pure-JAX reference mirroring the PyTorch forward (full f32 matmuls).
    g = jax.nn.softmax(jnp.einsum("bnd,de->bne", x, wg, precision=_HIGHEST) + bg[0],
                       axis=-1)
    outs = []
    for e in range(w1.shape[0]):
        h = jax.nn.gelu(jnp.einsum("bnd,dh->bnh", x, w1[e], precision=_HIGHEST)
                        + b1[e, 0], approximate=False)
        outs.append(jnp.einsum("bnh,hd->bnd", h, w2[e], precision=_HIGHEST) + b2[e, 0])
    outs = jnp.stack(outs, axis=0)
    return (g[None] * outs).sum(axis=0)


if __name__ == "__main__":
    B, N, dim, hidden_dim, num_experts = 2, 8, 32, 64, 4

    key = jax.random.PRNGKey(0)
    ks = jax.random.split(key, 7)

    # Deterministic synthetic parameters (PyTorch-style uniform init ranges).
    lim_g = 1.0 / math.sqrt(dim)
    lim_2 = 1.0 / math.sqrt(hidden_dim)
    wg = jax.random.uniform(ks[0], (dim, dim), jnp.float32, -lim_g, lim_g)
    bg = jax.random.uniform(ks[1], (1, dim), jnp.float32, -lim_g, lim_g)
    w1 = jax.random.uniform(ks[2], (num_experts, dim, hidden_dim), jnp.float32, -lim_g, lim_g)
    b1 = jax.random.uniform(ks[3], (num_experts, 1, hidden_dim), jnp.float32, -lim_g, lim_g)
    w2 = jax.random.uniform(ks[4], (num_experts, hidden_dim, dim), jnp.float32, -lim_2, lim_2)
    b2 = jax.random.uniform(ks[5], (num_experts, 1, dim), jnp.float32, -lim_2, lim_2)
    x = jax.random.normal(ks[6], (B, N, dim), jnp.float32)

    y_ref = _reference(x, wg, bg, w1, b1, w2, b2)

    # 1) Default path: weights prepared once; at this size everything is
    #    resident (single hidden chunk).
    params = prepare_moe_ffn_gating_params(wg, bg, w1, b1, w2, b2)
    y = jax.block_until_ready(moe_ffn_gating(x, params))
    assert y.shape == (B, N, dim)
    assert jnp.allclose(y, y_ref, atol=2e-4, rtol=2e-4), \
        float(jnp.max(jnp.abs(y - y_ref)))

    # 2) Streaming path: force small hidden chunks (kc > 1) and > 1 token tile
    #    to exercise the accumulate / finalize grid logic used for large models.
    params_s = prepare_moe_ffn_gating_params(wg, bg, w1, b1, w2, b2, max_tk=128)
    y_s = jax.block_until_ready(moe_ffn_gating(x, params_s, tm=8))
    assert jnp.allclose(y_s, y_ref, atol=2e-4, rtol=2e-4), \
        float(jnp.max(jnp.abs(y_s - y_ref)))

    print("KERNEL_OK")
</pallas_src>

<mosaic_0001>
module attributes {stable_mosaic.version = 11 : i64} {
  func.func @moe_ffn_gating_kernel(%arg0: i32, %arg1: i32, %arg2: memref<8x128xf32, #tpu.memory_space<vmem>>, %arg3: memref<128x128xf32, #tpu.memory_space<vmem>>, %arg4: memref<1x128xf32, #tpu.memory_space<vmem>>, %arg5: memref<128x256xf32, #tpu.memory_space<vmem>>, %arg6: memref<1x256xf32, #tpu.memory_space<vmem>>, %arg7: memref<256x128xf32, #tpu.memory_space<vmem>>, %arg8: memref<1x128xf32, #tpu.memory_space<vmem>>, %arg9: memref<8x128xf32, #tpu.memory_space<vmem>>) attributes {dimension_semantics = [#tpu.dimension_semantics<parallel>, #tpu.dimension_semantics<arbitrary>], iteration_bounds = array<i64: 2, 1>, scalar_prefetch = 0 : i64, scratch_operands = 0 : i64, tpu.core_type = #tpu.core_type<tc>, window_params = [{transform_indices = @transform_0, window_bounds = array<i64: 8, 128>}, {pipeline_mode = #tpu.pipeline_mode<synchronous>, transform_indices = @transform_1, window_bounds = array<i64: 128, 128>}, {pipeline_mode = #tpu.pipeline_mode<synchronous>, transform_indices = @transform_2, window_bounds = array<i64: 1, 128>}, {transform_indices = @transform_3, window_bounds = array<i64: 128, 256>}, {transform_indices = @transform_4, window_bounds = array<i64: 1, 256>}, {transform_indices = @transform_5, window_bounds = array<i64: 256, 128>}, {pipeline_mode = #tpu.pipeline_mode<synchronous>, transform_indices = @transform_6, window_bounds = array<i64: 1, 128>}, {transform_indices = @transform_7, window_bounds = array<i64: 8, 128>}]} {
    %c0_i32 = arith.constant 0 : i32
    %0 = arith.cmpi eq, %arg1, %c0_i32 : i32
    %1 = arith.extui %0 : i1 to i32
    %c0_i32_0 = arith.constant 0 : i32
    %2 = arith.cmpi ne, %1, %c0_i32_0 : i32
    scf.if %2 {
      %cst_18 = arith.constant 0.000000e+00 : f32
      %25 = vector.broadcast %cst_18 : f32 to vector<8x128xf32>
      %c0_19 = arith.constant 0 : index
      %c0_20 = arith.constant 0 : index
      %26 = vector.load %arg9[%c0_19, %c0_20] : memref<8x128xf32, #tpu.memory_space<vmem>>, vector<8x128xf32>
      tpu.vector_store %arg9[%c0_19, %c0_20], %25 {strides = array<i32>} : memref<8x128xf32, #tpu.memory_space<vmem>>, vector<8x128xf32>,
    } else {
    }
    %c0 = arith.constant 0 : index
    %c0_1 = arith.constant 0 : index
    %3 = vector.load %arg2[%c0, %c0_1] : memref<8x128xf32, #tpu.memory_space<vmem>>, vector<8x128xf32>
    %c0_2 = arith.constant 0 : index
    %c0_3 = arith.constant 0 : index
    %4 = vector.load %arg5[%c0_2, %c0_3] : memref<128x256xf32, #tpu.memory_space<vmem>>, vector<128x256xf32>
    %cst = arith.constant dense<0.000000e+00> : vector<8x256xf32>
    %5 = tpu.matmul %3, %4, %cst {dimension_numbers = #tpu.dot_dimension_numbers<[1], [0], [0], [1], [0, 0, 1, 1], [], []>, precision = #tpu.contract_precision<fp32>} : vector<8x128xf32>, vector<128x256xf32>, vector<8x256xf32> -> vector<8x256xf32>
    %c0_4 = arith.constant 0 : index
    %c0_5 = arith.constant 0 : index
    %6 = vector.load %arg6[%c0_4, %c0_5] : memref<1x256xf32, #tpu.memory_space<vmem>>, vector<1x256xf32>
    %7 = vector.broadcast %6 : vector<1x256xf32> to vector<8x256xf32>
    %8 = arith.addf %5, %7 : vector<8x256xf32>
    %cst_6 = arith.constant 5.000000e-01 : f32
    %9 = vector.broadcast %cst_6 : f32 to vector<8x256xf32>
    %10 = arith.mulf %9, %8 : vector<8x256xf32>
    %cst_7 = arith.constant 0.707106769 : f32
    %11 = vector.broadcast %cst_7 : f32 to vector<8x256xf32>
    %12 = arith.mulf %8, %11 : vector<8x256xf32>
    %13 = math.erf %12 : vector<8x256xf32>
    %cst_8 = arith.constant 1.000000e+00 : f32
    %14 = vector.broadcast %cst_8 : f32 to vector<8x256xf32>
    %15 = arith.addf %14, %13 : vector<8x256xf32>
    %16 = arith.mulf %10, %15 : vector<8x256xf32>
    %c0_9 = arith.constant 0 : index
    %c0_10 = arith.constant 0 : index
    %17 = vector.load %arg9[%c0_9, %c0_10] : memref<8x128xf32, #tpu.memory_space<vmem>>, vector<8x128xf32>
    %c0_11 = arith.constant 0 : index
    %c0_12 = arith.constant 0 : index
    %18 = vector.load %arg7[%c0_11, %c0_12] : memref<256x128xf32, #tpu.memory_space<vmem>>, vector<256x128xf32>
    %cst_13 = arith.constant dense<0.000000e+00> : vector<8x128xf32>
    %19 = tpu.matmul %16, %18, %cst_13 {dimension_numbers = #tpu.dot_dimension_numbers<[1], [0], [0], [1], [0, 0, 1, 1], [], []>, precision = #tpu.contract_precision<fp32>} : vector<8x256xf32>, vector<256x128xf32>, vector<8x128xf32> -> vector<8x128xf32>
    %20 = arith.addf %17, %19 : vector<8x128xf32>
    %c0_14 = arith.constant 0 : index
    %c0_15 = arith.constant 0 : index
    %21 = vector.load %arg9[%c0_14, %c0_15] : memref<8x128xf32, #tpu.memory_space<vmem>>, vector<8x128xf32>
    tpu.vector_store %arg9[%c0_14, %c0_15], %20 {strides = array<i32>} : memref<8x128xf32, #tpu.memory_space<vmem>>, vector<8x128xf32>,
    %c0_i32_16 = arith.constant 0 : i32
    %22 = arith.cmpi eq, %arg1, %c0_i32_16 : i32
    %23 = arith.extui %22 : i1 to i32
    %c0_i32_17 = arith.constant 0 : i32
    %24 = arith.cmpi ne, %23, %c0_i32_17 : i32
    scf.if %24 {
      %c0_18 = arith.constant 0 : index
      %c0_19 = arith.constant 0 : index
      %25 = vector.load %arg3[%c0_18, %c0_19] : memref<128x128xf32, #tpu.memory_space<vmem>>, vector<128x128xf32>
      %cst_20 = arith.constant dense<0.000000e+00> : vector<8x128xf32>
      %26 = tpu.matmul %3, %25, %cst_20 {dimension_numbers = #tpu.dot_dimension_numbers<[1], [0], [0], [1], [0, 0, 1, 1], [], []>, precision = #tpu.contract_precision<fp32>} : vector<8x128xf32>, vector<128x128xf32>, vector<8x128xf32> -> vector<8x128xf32>
      %c0_21 = arith.constant 0 : index
      %c0_22 = arith.constant 0 : index
      %27 = vector.load %arg4[%c0_21, %c0_22] : memref<1x128xf32, #tpu.memory_space<vmem>>, vector<1x128xf32>
      %28 = vector.broadcast %27 : vector<1x128xf32> to vector<8x128xf32>
      %29 = arith.addf %26, %28 : vector<8x128xf32>
      %cst_23 = arith.constant dense<0xFF800000> : vector<8xf32>
      %30 = vector.multi_reduction <maximumf>, %29, %cst_23 [1] : vector<8x128xf32> to vector<8xf32>
      %31 = vector.shape_cast %30 : vector<8xf32> to vector<8x1xf32>
      %32 = vector.broadcast %31 : vector<8x1xf32> to vector<8x128xf32>
      %33 = arith.subf %29, %32 : vector<8x128xf32>
      %34 = math.exp %33 : vector<8x128xf32>
      %cst_24 = arith.constant dense<0.000000e+00> : vector<8xf32>
      %35 = vector.multi_reduction <add>, %34, %cst_24 [1] : vector<8x128xf32> to vector<8xf32>
      %36 = vector.shape_cast %35 : vector<8xf32> to vector<8x1xf32>
      %37 = tpu.reciprocal %36 : vector<8x1xf32> -> vector<8x1xf32>
      %38 = vector.broadcast %37 : vector<8x1xf32> to vector<8x128xf32>
      %39 = arith.mulf %34, %38 : vector<8x128xf32>
      %c0_25 = arith.constant 0 : index
      %c0_26 = arith.constant 0 : index
      %40 = vector.load %arg9[%c0_25, %c0_26] : memref<8x128xf32, #tpu.memory_space<vmem>>, vector<8x128xf32>
      %c0_27 = arith.constant 0 : index
      %c0_28 = arith.constant 0 : index
      %41 = vector.load %arg8[%c0_27, %c0_28] : memref<1x128xf32, #tpu.memory_space<vmem>>, vector<1x128xf32>
      %42 = vector.broadcast %41 : vector<1x128xf32> to vector<8x128xf32>
      %43 = arith.addf %40, %42 : vector<8x128xf32>
      %44 = arith.mulf %39, %43 : vector<8x128xf32>
      %c0_29 = arith.constant 0 : index
      %c0_30 = arith.constant 0 : index
      %45 = vector.load %arg9[%c0_29, %c0_30] : memref<8x128xf32, #tpu.memory_space<vmem>>, vector<8x128xf32>
      tpu.vector_store %arg9[%c0_29, %c0_30], %44 {strides = array<i32>} : memref<8x128xf32, #tpu.memory_space<vmem>>, vector<8x128xf32>,
    } else {
    }
    return
  }
  func.func @transform_0(%arg0: i32, %arg1: i32) -> (i32, i32) {
    %c0_i32 = arith.constant 0 : i32
    %c0_i32_0 = arith.constant 0 : i32
    return %arg0, %c0_i32 : i32, i32
  }
  func.func @transform_1(%arg0: i32, %arg1: i32) -> (i32, i32) {
    %c0_i32 = arith.constant 0 : i32
    %c0_i32_0 = arith.constant 0 : i32
    %c0_i32_1 = arith.constant 0 : i32
    return %c0_i32, %c0_i32_0 : i32, i32
  }
  func.func @transform_2(%arg0: i32, %arg1: i32) -> (i32, i32) {
    %c0_i32 = arith.constant 0 : i32
    %c0_i32_0 = arith.constant 0 : i32
    %c0_i32_1 = arith.constant 0 : i32
    return %c0_i32, %c0_i32_0 : i32, i32
  }
  func.func @transform_3(%arg0: i32, %arg1: i32) -> (i32, i32) {
    %c0_i32 = arith.constant 0 : i32
    %c0_i32_0 = arith.constant 0 : i32
    return %c0_i32, %arg1 : i32, i32
  }
  func.func @transform_4(%arg0: i32, %arg1: i32) -> (i32, i32) {
    %c0_i32 = arith.constant 0 : i32
    %c0_i32_0 = arith.constant 0 : i32
    return %c0_i32, %arg1 : i32, i32
  }
  func.func @transform_5(%arg0: i32, %arg1: i32) -> (i32, i32) {
    %c0_i32 = arith.constant 0 : i32
    %c0_i32_0 = arith.constant 0 : i32
    return %arg1, %c0_i32 : i32, i32
  }
  func.func @transform_6(%arg0: i32, %arg1: i32) -> (i32, i32) {
    %c0_i32 = arith.constant 0 : i32
    %c0_i32_0 = arith.constant 0 : i32
    %c0_i32_1 = arith.constant 0 : i32
    return %c0_i32, %c0_i32_0 : i32, i32
  }
  func.func @transform_7(%arg0: i32, %arg1: i32) -> (i32, i32) {
    %c0_i32 = arith.constant 0 : i32
    %c0_i32_0 = arith.constant 0 : i32
    return %arg0, %c0_i32 : i32, i32
  }
}

</mosaic_0001>

<llo_original>
// kernel: tpu_custom_call.1
$region0: #{tpu_custom_call.1}
  #allocation0 [shape = 'u32[]', space=smem, size = 0x4, offset = 0x4, fixed_abs, tag = 'smem constant byte address 0x4 - core index']
  #allocation1 [shape = 'u32[144,128]{1,0:T(1,128)}', space=vmem, size = 0x12000, scoped, tag = 'internal scratch']
  %s0 = inlined_call_operand.hbm [shape: f32[16,128], index: 0, kind: input, shape index: {}]
  %s1 = inlined_call_operand.hbm [shape: f32[128,128], index: 1, kind: input, shape index: {}]
  %s2 = inlined_call_operand.vmem [shape: f32[1,128], index: 2, kind: input, shape index: {}]
  %s3 = inlined_call_operand.hbm [shape: f32[128,256], index: 3, kind: input, shape index: {}]
  %s4 = inlined_call_operand.vmem [shape: f32[1,256], index: 4, kind: input, shape index: {}]
  %s5 = inlined_call_operand.hbm [shape: f32[256,128], index: 5, kind: input, shape index: {}]
  %s6 = inlined_call_operand.vmem [shape: f32[1,128], index: 6, kind: input, shape index: {}]
  %s7 = inlined_call_operand.hbm [shape: f32[16,128], index: 7, kind: output, shape index: {}]
  %s8 = sld [smem:[#allocation0]]
  $region85: #{tpu_custom_call.1} parent=0
    _
  %s10 = ssub.s32 1, %s8
  %s11 = scalar_select 0, %s10, %s8
  $region1: #{tpu_custom_call.1} parent=0
    #allocation2 [shape = 'u8[8192]{0}', space=vmem, size = 0x2000, scoped, tag = 'input window, operand 0']
    #allocation3 [shape = 's32[2]{0}', space=sflag, size = 0x8, scoped, tag = 'scoped memory for tpu_custom_call.1']
    #allocation4 [shape = 's32[2]{0}', space=sflag, size = 0x8, scoped, tag = 'scoped memory for tpu_custom_call.1']
    #allocation5 [shape = 'u8[65536]{0}', space=vmem, size = 0x10000, scoped, tag = 'input window, operand 1, single buffered']
    #allocation6 [shape = 's32[1]{0}', space=sflag, size = 0x4, scoped, tag = 'scoped memory for tpu_custom_call.1']
    #allocation7 [shape = 'u8[131072]{0}', space=vmem, size = 0x20000, scoped, tag = 'input window, operand 3, single buffered']
    #allocation8 [shape = 'u8[131072]{0}', space=vmem, size = 0x20000, scoped, tag = 'input window, operand 5, single buffered']
    #allocation9 [shape = 's32[1]{0}', space=sflag, size = 0x4, scoped, tag = 'scoped memory for tpu_custom_call.1']
    #allocation10 [shape = 'u8[8192]{0}', space=vmem, size = 0x2000, scoped, tag = 'output window, operand 0']
    %12 = vsyncpa [#allocation3], 0
    %s13 = scalar_lea.sflag [#allocation3], 1
    %14 = vsyncpa %s13, 0
    %15 = vsyncpa [#allocation6], 0
    %16 = vsyncpa [#allocation9], 0
    %17 = vsyncpa [#allocation4], 0
    %s18 = scalar_lea.sflag [#allocation4], 1
    %19 = vsyncpa %s18, 0
    loop: start=0, step=1, limit=4
    $region2: #{tpu_custom_call.1} parent=1 // loop_pre_header
      _
    $region3: #{tpu_custom_call.1} parent=1 // loop_header
      %s21 = sphi 0, %s25
      %p22 = scmp.ge.s32.totalorder %s21, 4
      %s28 = sphi 0, %s40
      %s29 = sphi 0, %s36
      %s30 = sphi 0, %s28
      %s31 = sphi 0, %s29
      %s32 = sphi 0, %s30
      %s33 = sphi 0, %s31
      %s43 = sphi 0, %s45
      %s46 = sphi 0, %s43
      %s47 = sphi 0, %s46
      %s63 = sphi 0, %s47
      %s67 = sphi 0, %s67
      %s69 = sphi 0, %s67
      %s70 = sphi 0, %s69
      %s84 = sphi 0, %s70
      %s88 = sphi 0, %s88
      %s90 = sphi 0, %s88
      %s91 = sphi 0, %s90
      %s105 = sphi 0, %s91
      %s111 = sphi 0, %s113
      %s114 = sphi 0, %s111
      %s115 = sphi 0, %s114
      %s131 = sphi 0, %s115
      %s137 = sphi 0, %s139
      %s140 = sphi 0, %s137
      %s141 = sphi 0, %s140
      %s157 = sphi 0, %s141
      %s163 = sphi 0, %s165
      %s166 = sphi 0, %s163
      %s167 = sphi 0, %s166
      %s183 = sphi 0, %s167
      %s187 = sphi 0, %s187
      %s189 = sphi 0, %s187
      %s190 = sphi 0, %s189
      %s204 = sphi 0, %s190
      %s210 = sphi 0, %s212
      %s213 = sphi 0, %s210
      %s214 = sphi 0, %s213
      %s230 = sphi 0, %s214
    $region4: #{tpu_custom_call.1} parent=1 // loop_header_branch
      %24 = sbr.rel (%p22) target = $region8
    $region5: #{tpu_custom_call.1} parent=1 // loop_body
      %s26 = ssub.s32 %s21, 1
      %s27 = ssub.s32 %s21, 2
      %s34 = sadd.s32 1, %s29
      %p35 = scmp.ge.s32.totalorder %s34, 1
      %s36 = scalar_select %p35, 0, %s34
      %s37 = sadd.s32 1, %s28
      %s38 = scalar_select %p35, %s37, %s28
      %p39 = scmp.ge.s32.totalorder %s38, 2
      %s40 = scalar_select %p39, 0, %s38
      %s41 = ssub.s32 %s28, %s40
      %p42 = scmp.eq.s32.totalorder %s41, 0
      %s44 = sadd.s32 %s43, 1
      %s45 = scalar_select %p42, %s43, %s44
      %p48 = pneg %p42
      %p49 = scmp.eq.s32.totalorder %s21, 1
      %p50 = por %p48, %p49
      %p51 = scmp.ne.s32.totalorder %s43, %s46
      %p52 = scmp.eq.s32.totalorder %s21, 0
      %p53 = por %p51, %p52
      %p54 = scmp.ne.s32.totalorder %s43, %s46
      %p55 = scmp.eq.s32.totalorder %s26, 1
      %p56 = por %p54, %p55
      %p57 = scmp.ne.s32.totalorder %s46, %s47
      %p58 = scmp.eq.s32.totalorder %s26, 0
      %p59 = por %p57, %p58
      %p60 = scmp.ne.s32.totalorder %s46, %s47
      %p61 = scmp.eq.s32.totalorder %s27, 1
      %p62 = por %p60, %p61
      %p64 = scmp.ne.s32.totalorder %s47, %s63
      %p65 = scmp.eq.s32.totalorder %s27, 0
      %p66 = por %p64, %p65
      %s68 = sadd.s32 %s67, 1
      %p71 = scmp.eq.s32.totalorder %s21, 1
      %p72 = scmp.ne.s32.totalorder %s67, %s69
      %p73 = scmp.eq.s32.totalorder %s21, 0
      %p74 = por %p72, %p73
      %p75 = scmp.ne.s32.totalorder %s67, %s69
      %p76 = scmp.eq.s32.totalorder %s26, 1
      %p77 = por %p75, %p76
      %p78 = scmp.ne.s32.totalorder %s69, %s70
      %p79 = scmp.eq.s32.totalorder %s26, 0
      %p80 = por %p78, %p79
      %p81 = scmp.ne.s32.totalorder %s69, %s70
      %p82 = scmp.eq.s32.totalorder %s27, 1
      %p83 = por %p81, %p82
      %p85 = scmp.ne.s32.totalorder %s70, %s84
      %p86 = scmp.eq.s32.totalorder %s27, 0
      %p87 = por %p85, %p86
      %s89 = sadd.s32 %s88, 1
      %p92 = scmp.eq.s32.totalorder %s21, 1
      %p93 = scmp.ne.s32.totalorder %s88, %s90
      %p94 = scmp.eq.s32.totalorder %s21, 0
      %p95 = por %p93, %p94
      %p96 = scmp.ne.s32.totalorder %s88, %s90
      %p97 = scmp.eq.s32.totalorder %s26, 1
      %p98 = por %p96, %p97
      %p99 = scmp.ne.s32.totalorder %s90, %s91
      %p100 = scmp.eq.s32.totalorder %s26, 0
      %p101 = por %p99, %p100
      %p102 = scmp.ne.s32.totalorder %s90, %s91
      %p103 = scmp.eq.s32.totalorder %s27, 1
      %p104 = por %p102, %p103
      %p106 = scmp.ne.s32.totalorder %s91, %s105
      %p107 = scmp.eq.s32.totalorder %s27, 0
      %p108 = por %p106, %p107
      %s109 = ssub.s32 %s29, %s36
      %p110 = scmp.eq.s32.totalorder %s109, 0
      %s112 = sadd.s32 %s111, 1
      %s113 = scalar_select %p110, %s111, %s112
      %p116 = pneg %p110
      %p117 = scmp.eq.s32.totalorder %s21, 1
      %p118 = por %p116, %p117
      %p119 = scmp.ne.s32.totalorder %s111, %s114
      %p120 = scmp.eq.s32.totalorder %s21, 0
      %p121 = por %p119, %p120
      %p122 = scmp.ne.s32.totalorder %s111, %s114
      %p123 = scmp.eq.s32.totalorder %s26, 1
      %p124 = por %p122, %p123
      %p125 = scmp.ne.s32.totalorder %s114, %s115
      %p126 = scmp.eq.s32.totalorder %s26, 0
      %p127 = por %p125, %p126
      %p128 = scmp.ne.s32.totalorder %s114, %s115
      %p129 = scmp.eq.s32.totalorder %s27, 1
      %p130 = por %p128, %p129
      %p132 = scmp.ne.s32.totalorder %s115, %s131
      %p133 = scmp.eq.s32.totalorder %s27, 0
      %p134 = por %p132, %p133
      %s135 = ssub.s32 %s29, %s36
      %p136 = scmp.eq.s32.totalorder %s135, 0
      %s138 = sadd.s32 %s137, 1
      %s139 = scalar_select %p136, %s137, %s138
      %p142 = pneg %p136
      %p143 = scmp.eq.s32.totalorder %s21, 1
      %p144 = por %p142, %p143
      %p145 = scmp.ne.s32.totalorder %s137, %s140
      %p146 = scmp.eq.s32.totalorder %s21, 0
      %p147 = por %p145, %p146
      %p148 = scmp.ne.s32.totalorder %s137, %s140
      %p149 = scmp.eq.s32.totalorder %s26, 1
      %p150 = por %p148, %p149
      %p151 = scmp.ne.s32.totalorder %s140, %s141
      %p152 = scmp.eq.s32.totalorder %s26, 0
      %p153 = por %p151, %p152
      %p154 = scmp.ne.s32.totalorder %s140, %s141
      %p155 = scmp.eq.s32.totalorder %s27, 1
      %p156 = por %p154, %p155
      %p158 = scmp.ne.s32.totalorder %s141, %s157
      %p159 = scmp.eq.s32.totalorder %s27, 0
      %p160 = por %p158, %p159
      %s161 = ssub.s32 %s29, %s36
      %p162 = scmp.eq.s32.totalorder %s161, 0
      %s164 = sadd.s32 %s163, 1
      %s165 = scalar_select %p162, %s163, %s164
      %p168 = pneg %p162
      %p169 = scmp.eq.s32.totalorder %s21, 1
      %p170 = por %p168, %p169
      %p171 = scmp.ne.s32.totalorder %s163, %s166
      %p172 = scmp.eq.s32.totalorder %s21, 0
      %p173 = por %p171, %p172
      %p174 = scmp.ne.s32.totalorder %s163, %s166
      %p175 = scmp.eq.s32.totalorder %s26, 1
      %p176 = por %p174, %p175
      %p177 = scmp.ne.s32.totalorder %s166, %s167
      %p178 = scmp.eq.s32.totalorder %s26, 0
      %p179 = por %p177, %p178
      %p180 = scmp.ne.s32.totalorder %s166, %s167
      %p181 = scmp.eq.s32.totalorder %s27, 1
      %p182 = por %p180, %p181
      %p184 = scmp.ne.s32.totalorder %s167, %s183
      %p185 = scmp.eq.s32.totalorder %s27, 0
      %p186 = por %p184, %p185
      %s188 = sadd.s32 %s187, 1
      %p191 = scmp.eq.s32.totalorder %s21, 1
      %p192 = scmp.ne.s32.totalorder %s187, %s189
      %p193 = scmp.eq.s32.totalorder %s21, 0
      %p194 = por %p192, %p193
      %p195 = scmp.ne.s32.totalorder %s187, %s189
      %p196 = scmp.eq.s32.totalorder %s26, 1
      %p197 = por %p195, %p196
      %p198 = scmp.ne.s32.totalorder %s189, %s190
      %p199 = scmp.eq.s32.totalorder %s26, 0
      %p200 = por %p198, %p199
      %p201 = scmp.ne.s32.totalorder %s189, %s190
      %p202 = scmp.eq.s32.totalorder %s27, 1
      %p203 = por %p201, %p202
      %p205 = scmp.ne.s32.totalorder %s190, %s204
      %p206 = scmp.eq.s32.totalorder %s27, 0
      %p207 = por %p205, %p206
      %s208 = ssub.s32 %s28, %s40
      %p209 = scmp.eq.s32.totalorder %s208, 0
      %s211 = sadd.s32 %s210, 1
      %s212 = scalar_select %p209, %s210, %s211
      %p215 = pneg %p209
      %p216 = scmp.eq.s32.totalorder %s21, 1
      %p217 = por %p215, %p216
      %p218 = scmp.ne.s32.totalorder %s210, %s213
      %p219 = scmp.eq.s32.totalorder %s21, 0
      %p220 = por %p218, %p219
      %p221 = scmp.ne.s32.totalorder %s210, %s213
      %p222 = scmp.eq.s32.totalorder %s26, 1
      %p223 = por %p221, %p222
      %p224 = scmp.ne.s32.totalorder %s213, %s214
      %p225 = scmp.eq.s32.totalorder %s26, 0
      %p226 = por %p224, %p225
      %p227 = scmp.ne.s32.totalorder %s213, %s214
      %p228 = scmp.eq.s32.totalorder %s27, 1
      %p229 = por %p227, %p228
      %p231 = scmp.ne.s32.totalorder %s214, %s230
      %p232 = scmp.eq.s32.totalorder %s27, 0
      %p233 = por %p231, %p232
      %p234 = scmp.le.s32.totalorder 1, %s21
      %p235 = scmp.lt.s32.totalorder %s21, 3
      %p236 = pnand %p234, %p235
      %p237 = pneg %p236
      // Predicated region
      $region9: #{tpu_custom_call.1} parent=5 // pred_check
        _
      $region10: #{tpu_custom_call.1} parent=5 // pred_check_branch
        %239 = sbr.rel (%p236) target = $region12
      $region11: #{tpu_custom_call.1} parent=5 // pred_region
        %s240 = ssub.s32 %s21, 1
        // Predicated region
        $region13: #{tpu_custom_call.1} parent=11 // pred_check
          %p241 = pneg %p80
        $region14: #{tpu_custom_call.1} parent=11 // pred_check_branch
          %243 = sbr.rel (%p241) target = $region16
        $region15: #{tpu_custom_call.1} parent=11 // pred_region
          %s245 = ssub.s32 2048, 2048
          %246 = vsyncadd [#allocation6], %s245
          %s247 = sshll.u32 [#allocation5], 4
          %s248 = int_to_ptr.vmem [resolvable:$true] %s247
          %253 = dma.hbm_to_vmem [thread:$0]  %s1, 2048, %s248, [#allocation6], 128, 128, 8
        $region16: #{tpu_custom_call.1} parent=11 // pred_fallthru
          _
        // Predicated region
        $region17: #{tpu_custom_call.1} parent=11 // pred_check
          %p254 = pneg %p101
        $region18: #{tpu_custom_call.1} parent=11 // pred_check_branch
          %256 = sbr.rel (%p254) target = $region20
        $region19: #{tpu_custom_call.1} parent=11 // pred_region
          _
        $region20: #{tpu_custom_call.1} parent=11 // pred_fallthru
          _
        // Predicated region
        $region21: #{tpu_custom_call.1} parent=11 // pred_check
          %p257 = pneg %p127
        $region22: #{tpu_custom_call.1} parent=11 // pred_check_branch
          %259 = sbr.rel (%p257) target = $region24
        $region23: #{tpu_custom_call.1} parent=11 // pred_region
          %s260 = smul.u32 2, %s31
          %s262 = ssub.s32 4096, 4096
          %263 = vsyncadd [#allocation6], %s262
          %s264 = smul.addr %s260, 128
          %s265 = scalar_lea.hbm %s3, %s264
          %s266 = sshll.u32 [#allocation7], 4
          %s267 = int_to_ptr.vmem [resolvable:$true] %s266
          %272 = dma.hbm_to_vmem [thread:$0]  %s265, 4096, %s267, [#allocation6], 256, 256, 16
        $region24: #{tpu_custom_call.1} parent=11 // pred_fallthru
          _
        // Predicated region
        $region25: #{tpu_custom_call.1} parent=11 // pred_check
          %p273 = pneg %p153
        $region26: #{tpu_custom_call.1} parent=11 // pred_check_branch
          %275 = sbr.rel (%p273) target = $region28
        $region27: #{tpu_custom_call.1} parent=11 // pred_region
          %s276 = smul.u32 2, %s31
          %p277 = scmp.lt.s32.totalorder %s276, 1
          %s278 = scalar_select %p277, %s276, 1
          %s279 = scalar_lea.vmem %s4, %s278
          %s280 = smul.u32 2, %s31
        $region28: #{tpu_custom_call.1} parent=11 // pred_fallthru
          _
        // Predicated region
        $region29: #{tpu_custom_call.1} parent=11 // pred_check
          %p281 = pneg %p179
        $region30: #{tpu_custom_call.1} parent=11 // pred_check_branch
          %283 = sbr.rel (%p281) target = $region32
        $region31: #{tpu_custom_call.1} parent=11 // pred_region
          %s284 = smul.u32 32, %s31
          %s286 = ssub.s32 4096, 4096
          %287 = vsyncadd [#allocation9], %s286
          %s288 = smul.addr %s284, 128
          %s289 = scalar_lea.hbm %s5, %s288
          %s290 = sshll.u32 [#allocation8], 4
          %s291 = int_to_ptr.vmem [resolvable:$true] %s290
          %296 = dma.hbm_to_vmem [thread:$0]  %s289, 4096, %s291, [#allocation9], 128, 128, 8
        $region32: #{tpu_custom_call.1} parent=11 // pred_fallthru
          _
        // Predicated region
        $region33: #{tpu_custom_call.1} parent=11 // pred_check
          %p297 = pneg %p200
        $region34: #{tpu_custom_call.1} parent=11 // pred_check_branch
          %299 = sbr.rel (%p297) target = $region36
        $region35: #{tpu_custom_call.1} parent=11 // pred_region
          _
        $region36: #{tpu_custom_call.1} parent=11 // pred_fallthru
          _
      $region12: #{tpu_custom_call.1} parent=5 // pred_fallthru
        _
      %p300 = scmp.lt.s32.totalorder %s21, 2
      // Predicated region
      $region37: #{tpu_custom_call.1} parent=5 // pred_check
        %p301 = pneg %p300
      $region38: #{tpu_custom_call.1} parent=5 // pred_check_branch
        %303 = sbr.rel (%p301) target = $region40
      $region39: #{tpu_custom_call.1} parent=5 // pred_region
        // Predicated region
        $region41: #{tpu_custom_call.1} parent=39 // pred_check
          %p304 = pneg %p53
        $region42: #{tpu_custom_call.1} parent=39 // pred_check_branch
          %306 = sbr.rel (%p304) target = $region44
        $region43: #{tpu_custom_call.1} parent=39 // pred_region
          %s307 = sand.u32 %s43, 1
          %s308 = scalar_lea.sflag [#allocation3], %s307
          %s309 = sand.u32 %s43, 1
          %s310 = smul.addr %s309, 8
          %s311 = scalar_lea.vmem [#allocation2], %s310
          %s313 = ssub.s32 128, 128
          %314 = vsyncadd %s308, %s313
          %s315 = smul.addr %s28, 128
          %s316 = scalar_lea.hbm %s0, %s315
          %s318 = sshll.u32 %s311, 4
          %s319 = int_to_ptr.vmem [resolvable:$true] %s318
          %321 = dma.hbm_to_vmem [thread:$0]  %s316, 128, %s319, %s308
        $region44: #{tpu_custom_call.1} parent=39 // pred_fallthru
          _
      $region40: #{tpu_custom_call.1} parent=5 // pred_fallthru
        _
      %p322 = scmp.le.s32.totalorder 1, %s21
      %p323 = scmp.lt.s32.totalorder %s21, 3
      %p324 = pnand %p322, %p323
      %p325 = pneg %p324
      // Predicated region
      $region45: #{tpu_custom_call.1} parent=5 // pred_check
        _
      $region46: #{tpu_custom_call.1} parent=5 // pred_check_branch
        %327 = sbr.rel (%p324) target = $region48
      $region47: #{tpu_custom_call.1} parent=5 // pred_region
        %s328 = ssub.s32 %s21, 1
        %s329 = sand.u32 %s46, 1
        %s330 = scalar_lea.sflag [#allocation3], %s329
        %s331 = sand.u32 %s46, 1
        %s332 = smul.addr %s331, 8
        %s333 = scalar_lea.vmem [#allocation2], %s332
        // Predicated region
        $region49: #{tpu_custom_call.1} parent=47 // pred_check
          %p334 = pneg %p59
        $region50: #{tpu_custom_call.1} parent=47 // pred_check_branch
          %336 = sbr.rel (%p334) target = $region52
        $region51: #{tpu_custom_call.1} parent=47 // pred_region
          %337 = dma.done %s330, 128
        $region52: #{tpu_custom_call.1} parent=47 // pred_fallthru
          _
        // Predicated region
        $region53: #{tpu_custom_call.1} parent=47 // pred_check
          %p338 = pneg %p80
        $region54: #{tpu_custom_call.1} parent=47 // pred_check_branch
          %340 = sbr.rel (%p338) target = $region56
        $region55: #{tpu_custom_call.1} parent=47 // pred_region
          %341 = dma.done [#allocation6], 2048
        $region56: #{tpu_custom_call.1} parent=47 // pred_fallthru
          _
        // Predicated region
        $region57: #{tpu_custom_call.1} parent=47 // pred_check
          %p342 = pneg %p127
        $region58: #{tpu_custom_call.1} parent=47 // pred_check_branch
          %344 = sbr.rel (%p342) target = $region60
        $region59: #{tpu_custom_call.1} parent=47 // pred_region
          %345 = dma.done [#allocation6], 4096
        $region60: #{tpu_custom_call.1} parent=47 // pred_fallthru
          _
        // Predicated region
        $region61: #{tpu_custom_call.1} parent=47 // pred_check
          %p346 = pneg %p179
        $region62: #{tpu_custom_call.1} parent=47 // pred_check_branch
          %348 = sbr.rel (%p346) target = $region64
        $region63: #{tpu_custom_call.1} parent=47 // pred_region
          %349 = dma.done [#allocation9], 4096
        $region64: #{tpu_custom_call.1} parent=47 // pred_fallthru
          _
        %s350 = sand.u32 %s46, 1
        %s351 = scalar_lea.sflag [#allocation3], %s350
        %s352 = sand.u32 %s46, 1
        %s353 = smul.addr %s352, 8
        %s354 = scalar_lea.vmem [#allocation2], %s353
        %p355 = pneg %p59
        %p356 = pneg %p56
        %p357 = pneg %p80
        %p358 = pneg %p77
        %p359 = pneg %p101
        %p360 = pneg %p98
        %p361 = pneg %p127
        %p362 = pneg %p124
        %s363 = smul.u32 2, %s31
        %p364 = scmp.lt.s32.totalorder %s363, 1
        %s365 = scalar_select %p364, %s363, 1
        %s366 = scalar_lea.vmem %s4, %s365
        %p367 = pneg %p153
        %p368 = pneg %p150
        %p369 = pneg %p179
        %p370 = pneg %p176
        %p371 = pneg %p200
        %p372 = pneg %p197
        %p373 = pneg %p226
        %p374 = pneg %p223
        %s375 = sand.u32 %s213, 1
        %s376 = scalar_lea.sflag [#allocation4], %s375
        %s377 = sand.u32 %s213, 1
        %s378 = smul.addr %s377, 8
        %s379 = scalar_lea.vmem [#allocation10], %s378
        %s380 = smul.u32 2, %s31
        %s381 = smul.u32 2, %s31
        %p382 = scmp.lt.s32.totalorder %s381, 1
        %s383 = scalar_select %p382, %s381, 1
        %s384 = scalar_lea.vmem %s4, %s383
        %s385 = smul.u32 2, %s31
        %s386 = smul.u32 32, %s31
        %p387 = scmp.eq.s32.totalorder %s31, 0
        // Predicated region
        $region65: #{tpu_custom_call.1} parent=47 // pred_check
          %p388 = pneg %p387
        $region66: #{tpu_custom_call.1} parent=47 // pred_check_branch
          %390 = sbr.rel (%p388) target = $region68
        $region67: #{tpu_custom_call.1} parent=47 // pred_region
          %391 = vst [vmem:[%s379] sm:$0xff] 0.0
        $region68: #{tpu_custom_call.1} parent=47 // pred_fallthru
          _
        %v392 = vld [vmem:[%s333] sm:$0xff]
        %v393 = vld [vmem:[#allocation7] sm:$0xff]
        %v394 = vld [vmem:[#allocation7 + $0x8] sm:$0xff]
        %v395 = vld [vmem:[#allocation7 + $0x10] sm:$0xff]
        %v396 = vld [vmem:[#allocation7 + $0x18] sm:$0xff]
        %v397 = vld [vmem:[#allocation7 + $0x20] sm:$0xff]
        %v398 = vld [vmem:[#allocation7 + $0x28] sm:$0xff]
        %v399 = vld [vmem:[#allocation7 + $0x30] sm:$0xff]
        %v400 = vld [vmem:[#allocation7 + $0x38] sm:$0xff]
        %v401 = vld [vmem:[#allocation7 + $0x40] sm:$0xff]
        %v402 = vld [vmem:[#allocation7 + $0x48] sm:$0xff]
        %v403 = vld [vmem:[#allocation7 + $0x50] sm:$0xff]
        %v404 = vld [vmem:[#allocation7 + $0x58] sm:$0xff]
        %v405 = vld [vmem:[#allocation7 + $0x60] sm:$0xff]
        %v406 = vld [vmem:[#allocation7 + $0x68] sm:$0xff]
        %v407 = vld [vmem:[#allocation7 + $0x70] sm:$0xff]
        %v408 = vld [vmem:[#allocation7 + $0x78] sm:$0xff]
        %v409 = vld [vmem:[#allocation7 + $0x80] sm:$0xff]
        %v410 = vld [vmem:[#allocation7 + $0x88] sm:$0xff]
        %v411 = vld [vmem:[#allocation7 + $0x90] sm:$0xff]
        %v412 = vld [vmem:[#allocation7 + $0x98] sm:$0xff]
        %v413 = vld [vmem:[#allocation7 + $0xa0] sm:$0xff]
        %v414 = vld [vmem:[#allocation7 + $0xa8] sm:$0xff]
        %v415 = vld [vmem:[#allocation7 + $0xb0] sm:$0xff]
        %v416 = vld [vmem:[#allocation7 + $0xb8] sm:$0xff]
        %v417 = vld [vmem:[#allocation7 + $0xc0] sm:$0xff]
        %v418 = vld [vmem:[#allocation7 + $0xc8] sm:$0xff]
        %v419 = vld [vmem:[#allocation7 + $0xd0] sm:$0xff]
        %v420 = vld [vmem:[#allocation7 + $0xd8] sm:$0xff]
        %v421 = vld [vmem:[#allocation7 + $0xe0] sm:$0xff]
        %v422 = vld [vmem:[#allocation7 + $0xe8] sm:$0xff]
        %v423 = vld [vmem:[#allocation7 + $0xf0] sm:$0xff]
        %v424 = vld [vmem:[#allocation7 + $0xf8] sm:$0xff]
        %v425 = vld [vmem:[%s384] sm:$0x3]
        %v427 = vlaneseq
        %v428 = vshrl.u32 %v427, 7
        %v429 = vsub.s32 0, %v428
        %v430 = vrot.slane %v425, %v429
        %v431 = vlaneseq
        %v432 = vshrl.u32 %v431, 7
        %v433 = vsub.s32 1, %v432
        %v434 = vrot.slane %v425, %v433
        %v437 = vand.u32 %v394, 4294901760
        %438 = vmatprep.subr.mxu0 %v437
        %v439 = vand.u32 %v393, 4294901760
        %440 = vmatpush1.msra.mxu0 %v439
        %v441 = vand.u32 %v396, 4294901760
        %442 = vmatprep.subr.mxu0 %v441
        %v443 = vand.u32 %v395, 4294901760
        %444 = vmatpush1.msra.mxu0 %v443
        %v445 = vand.u32 %v398, 4294901760
        %446 = vmatprep.subr.mxu0 %v445
        %v447 = vand.u32 %v397, 4294901760
        %448 = vmatpush1.msra.mxu0 %v447
        %v449 = vand.u32 %v400, 4294901760
        %450 = vmatprep.subr.mxu0 %v449
        %v451 = vand.u32 %v399, 4294901760
        %452 = vmatpush1.msra.mxu0 %v451
        %v453 = vand.u32 %v402, 4294901760
        %454 = vmatprep.subr.mxu0 %v453
        %v455 = vand.u32 %v401, 4294901760
        %456 = vmatpush1.msra.mxu0 %v455
        %v457 = vand.u32 %v404, 4294901760
        %458 = vmatprep.subr.mxu0 %v457
        %v459 = vand.u32 %v403, 4294901760
        %460 = vmatpush1.msra.mxu0 %v459
        %v461 = vand.u32 %v406, 4294901760
        %462 = vmatprep.subr.mxu0 %v461
        %v463 = vand.u32 %v405, 4294901760
        %464 = vmatpush1.msra.mxu0 %v463
        %v465 = vand.u32 %v408, 4294901760
        %466 = vmatprep.subr.mxu0 %v465
        %v467 = vand.u32 %v407, 4294901760
        %468 = vmatpush1.msra.mxu0 %v467
        %v469 = vand.u32 %v410, 4294901760
        %470 = vmatprep.subr.mxu0 %v469
        %v471 = vand.u32 %v409, 4294901760
        %472 = vmatpush1.msra.mxu0 %v471
        %v473 = vand.u32 %v412, 4294901760
        %474 = vmatprep.subr.mxu0 %v473
        %v475 = vand.u32 %v411, 4294901760
        %476 = vmatpush1.msra.mxu0 %v475
        %v477 = vand.u32 %v414, 4294901760
        %478 = vmatprep.subr.mxu0 %v477
        %v479 = vand.u32 %v413, 4294901760
        %480 = vmatpush1.msra.mxu0 %v479
        %v481 = vand.u32 %v416, 4294901760
        %482 = vmatprep.subr.mxu0 %v481
        %v483 = vand.u32 %v415, 4294901760
        %484 = vmatpush1.msra.mxu0 %v483
        %v485 = vand.u32 %v418, 4294901760
        %486 = vmatprep.subr.mxu0 %v485
        %v487 = vand.u32 %v417, 4294901760
        %488 = vmatpush1.msra.mxu0 %v487
        %v489 = vand.u32 %v420, 4294901760
        %490 = vmatprep.subr.mxu0 %v489
        %v491 = vand.u32 %v419, 4294901760
        %492 = vmatpush1.msra.mxu0 %v491
        %v493 = vand.u32 %v422, 4294901760
        %494 = vmatprep.subr.mxu0 %v493
        %v495 = vand.u32 %v421, 4294901760
        %496 = vmatpush1.msra.mxu0 %v495
        %v497 = vand.u32 %v424, 4294901760
        %498 = vmatprep.subr.mxu0 %v497
        %v499 = vand.u32 %v423, 4294901760
        %500 = vmatpush1.msra.mxu0 %v499
        %501 = vmatprep.subr.mxu0 0.0
        %502 = vmatpush1.msra.mxu0 0.0
        %503 = vmatprep.subr.mxu0 0.0
        %504 = vmatpush1.msra.mxu0 0.0
        %505 = vmatprep.subr.mxu0 0.0
        %506 = vmatpush1.msra.mxu0 0.0
        %507 = vmatprep.subr.mxu0 0.0
        %508 = vmatpush1.msra.mxu0 0.0
        %509 = vmatprep.subr.mxu0 0.0
        %510 = vmatpush1.msra.mxu0 0.0
        %511 = vmatprep.subr.mxu0 0.0
        %512 = vmatpush1.msra.mxu0 0.0
        %513 = vmatprep.subr.mxu0 0.0
        %514 = vmatpush1.msra.mxu0 0.0
        %515 = vmatprep.subr.mxu0 0.0
        %516 = vmatpush1.msra.mxu0 0.0
        %517 = vmatprep.subr.mxu0 0.0
        %518 = vmatpush1.msra.mxu0 0.0
        %519 = vmatprep.subr.mxu0 0.0
        %520 = vmatpush1.msra.mxu0 0.0
        %521 = vmatprep.subr.mxu0 0.0
        %522 = vmatpush1.msra.mxu0 0.0
        %523 = vmatprep.subr.mxu0 0.0
        %524 = vmatpush1.msra.mxu0 0.0
        %525 = vmatprep.subr.mxu0 0.0
        %526 = vmatpush1.msra.mxu0 0.0
        %527 = vmatprep.subr.mxu0 0.0
        %528 = vmatpush1.msra.mxu0 0.0
        %529 = vmatprep.subr.mxu0 0.0
        %530 = vmatpush1.msra.mxu0 0.0
        %531 = vmatprep.subr.mxu0 0.0
        %532 = vmatpush1.msra.mxu0 0.0
        %533 = vmatprep.mubr.f32.mxu0 0.0
        %v534 = vand.u32 %v392, 4294901760
        %v535 = vsub.f32 %v392, %v534
        %v536 = vand.u32 %v535, 4294901760
        %v537 = vsub.f32 %v535, %v536
        %v538 = vand.u32 %v537, 4294901760
        %539 = vmatmul.mubr.f32.gmra.mrb[0].mxu0 %v538
        %v540 = vpop.f32.mrb[0].mxu0
        %v541 = vadd.f32 %v430, %v540
        %v542 = vpop.f32.mrb[0].mxu0
        %v543 = vadd.f32 %v434, %v542
        %544 = vdwg.mxu0
        %v545 = vand.u32 %v394, 4294901760
        %v546 = vsub.f32 %v394, %v545
        %v547 = vand.u32 %v546, 4294901760
        %v548 = vsub.f32 %v546, %v547
        %v549 = vand.u32 %v548, 4294901760
        %550 = vmatprep.subr.mxu0 %v549
        %v551 = vand.u32 %v393, 4294901760
        %v552 = vsub.f32 %v393, %v551
        %v553 = vand.u32 %v552, 4294901760
        %v554 = vsub.f32 %v552, %v553
        %v555 = vand.u32 %v554, 4294901760
        %556 = vmatpush1.msra.mxu0 %v555
        %v557 = vand.u32 %v396, 4294901760
        %v558 = vsub.f32 %v396, %v557
        %v559 = vand.u32 %v558, 4294901760
        %v560 = vsub.f32 %v558, %v559
        %v561 = vand.u32 %v560, 4294901760
        %562 = vmatprep.subr.mxu0 %v561
        %v563 = vand.u32 %v395, 4294901760
        %v564 = vsub.f32 %v395, %v563
        %v565 = vand.u32 %v564, 4294901760
        %v566 = vsub.f32 %v564, %v565
        %v567 = vand.u32 %v566, 4294901760
        %568 = vmatpush1.msra.mxu0 %v567
        %v569 = vand.u32 %v398, 4294901760
        %v570 = vsub.f32 %v398, %v569
        %v571 = vand.u32 %v570, 4294901760
        %v572 = vsub.f32 %v570, %v571
        %v573 = vand.u32 %v572, 4294901760
        %574 = vmatprep.subr.mxu0 %v573
        %v575 = vand.u32 %v397, 4294901760
        %v576 = vsub.f32 %v397, %v575
        %v577 = vand.u32 %v576, 4294901760
        %v578 = vsub.f32 %v576, %v577
        %v579 = vand.u32 %v578, 4294901760
        %580 = vmatpush1.msra.mxu0 %v579
        %v581 = vand.u32 %v400, 4294901760
        %v582 = vsub.f32 %v400, %v581
        %v583 = vand.u32 %v582, 4294901760
        %v584 = vsub.f32 %v582, %v583
        %v585 = vand.u32 %v584, 4294901760
        %586 = vmatprep.subr.mxu0 %v585
        %v587 = vand.u32 %v399, 4294901760
        %v588 = vsub.f32 %v399, %v587
        %v589 = vand.u32 %v588, 4294901760
        %v590 = vsub.f32 %v588, %v589
        %v591 = vand.u32 %v590, 4294901760
        %592 = vmatpush1.msra.mxu0 %v591
        %v593 = vand.u32 %v402, 4294901760
        %v594 = vsub.f32 %v402, %v593
        %v595 = vand.u32 %v594, 4294901760
        %v596 = vsub.f32 %v594, %v595
        %v597 = vand.u32 %v596, 4294901760
        %598 = vmatprep.subr.mxu0 %v597
        %v599 = vand.u32 %v401, 4294901760
        %v600 = vsub.f32 %v401, %v599
        %v601 = vand.u32 %v600, 4294901760
        %v602 = vsub.f32 %v600, %v601
        %v603 = vand.u32 %v602, 4294901760
        %604 = vmatpush1.msra.mxu0 %v603
        %v605 = vand.u32 %v404, 4294901760
        %v606 = vsub.f32 %v404, %v605
        %v607 = vand.u32 %v606, 4294901760
        %v608 = vsub.f32 %v606, %v607
        %v609 = vand.u32 %v608, 4294901760
        %610 = vmatprep.subr.mxu0 %v609
        %v611 = vand.u32 %v403, 4294901760
        %v612 = vsub.f32 %v403, %v611
        %v613 = vand.u32 %v612, 4294901760
        %v614 = vsub.f32 %v612, %v613
        %v615 = vand.u32 %v614, 4294901760
        %616 = vmatpush1.msra.mxu0 %v615
        %v617 = vand.u32 %v406, 4294901760
        %v618 = vsub.f32 %v406, %v617
        %v619 = vand.u32 %v618, 4294901760
        %v620 = vsub.f32 %v618, %v619
        %v621 = vand.u32 %v620, 4294901760
        %622 = vmatprep.subr.mxu0 %v621
        %v623 = vand.u32 %v405, 4294901760
        %v624 = vsub.f32 %v405, %v623
        %v625 = vand.u32 %v624, 4294901760
        %v626 = vsub.f32 %v624, %v625
        %v627 = vand.u32 %v626, 4294901760
        %628 = vmatpush1.msra.mxu0 %v627
        %v629 = vand.u32 %v408, 4294901760
        %v630 = vsub.f32 %v408, %v629
        %v631 = vand.u32 %v630, 4294901760
        %v632 = vsub.f32 %v630, %v631
        %v633 = vand.u32 %v632, 4294901760
        %634 = vmatprep.subr.mxu0 %v633
        %v635 = vand.u32 %v407, 4294901760
        %v636 = vsub.f32 %v407, %v635
        %v637 = vand.u32 %v636, 4294901760
        %v638 = vsub.f32 %v636, %v637
        %v639 = vand.u32 %v638, 4294901760
        %640 = vmatpush1.msra.mxu0 %v639
        %v641 = vand.u32 %v410, 4294901760
        %v642 = vsub.f32 %v410, %v641
        %v643 = vand.u32 %v642, 4294901760
        %v644 = vsub.f32 %v642, %v643
        %v645 = vand.u32 %v644, 4294901760
        %646 = vmatprep.subr.mxu0 %v645
        %v647 = vand.u32 %v409, 4294901760
        %v648 = vsub.f32 %v409, %v647
        %v649 = vand.u32 %v648, 4294901760
        %v650 = vsub.f32 %v648, %v649
        %v651 = vand.u32 %v650, 4294901760
        %652 = vmatpush1.msra.mxu0 %v651
        %v653 = vand.u32 %v412, 4294901760
        %v654 = vsub.f32 %v412, %v653
        %v655 = vand.u32 %v654, 4294901760
        %v656 = vsub.f32 %v654, %v655
        %v657 = vand.u32 %v656, 4294901760
        %658 = vmatprep.subr.mxu0 %v657
        %v659 = vand.u32 %v411, 4294901760
        %v660 = vsub.f32 %v411, %v659
        %v661 = vand.u32 %v660, 4294901760
        %v662 = vsub.f32 %v660, %v661
        %v663 = vand.u32 %v662, 4294901760
        %664 = vmatpush1.msra.mxu0 %v663
        %v665 = vand.u32 %v414, 4294901760
        %v666 = vsub.f32 %v414, %v665
        %v667 = vand.u32 %v666, 4294901760
        %v668 = vsub.f32 %v666, %v667
        %v669 = vand.u32 %v668, 4294901760
        %670 = vmatprep.subr.mxu0 %v669
        %v671 = vand.u32 %v413, 4294901760
        %v672 = vsub.f32 %v413, %v671
        %v673 = vand.u32 %v672, 4294901760
        %v674 = vsub.f32 %v672, %v673
        %v675 = vand.u32 %v674, 4294901760
        %676 = vmatpush1.msra.mxu0 %v675
        %v677 = vand.u32 %v416, 4294901760
        %v678 = vsub.f32 %v416, %v677
        %v679 = vand.u32 %v678, 4294901760
        %v680 = vsub.f32 %v678, %v679
        %v681 = vand.u32 %v680, 4294901760
        %682 = vmatprep.subr.mxu0 %v681
        %v683 = vand.u32 %v415, 4294901760
        %v684 = vsub.f32 %v415, %v683
        %v685 = vand.u32 %v684, 4294901760
        %v686 = vsub.f32 %v684, %v685
        %v687 = vand.u32 %v686, 4294901760
        %688 = vmatpush1.msra.mxu0 %v687
        %v689 = vand.u32 %v418, 4294901760
        %v690 = vsub.f32 %v418, %v689
        %v691 = vand.u32 %v690, 4294901760
        %v692 = vsub.f32 %v690, %v691
        %v693 = vand.u32 %v692, 4294901760
        %694 = vmatprep.subr.mxu0 %v693
        %v695 = vand.u32 %v417, 4294901760
        %v696 = vsub.f32 %v417, %v695
        %v697 = vand.u32 %v696, 4294901760
        %v698 = vsub.f32 %v696, %v697
        %v699 = vand.u32 %v698, 4294901760
        %700 = vmatpush1.msra.mxu0 %v699
        %v701 = vand.u32 %v420, 4294901760
        %v702 = vsub.f32 %v420, %v701
        %v703 = vand.u32 %v702, 4294901760
        %v704 = vsub.f32 %v702, %v703
        %v705 = vand.u32 %v704, 4294901760
        %706 = vmatprep.subr.mxu0 %v705
        %v707 = vand.u32 %v419, 4294901760
        %v708 = vsub.f32 %v419, %v707
        %v709 = vand.u32 %v708, 4294901760
        %v710 = vsub.f32 %v708, %v709
        %v711 = vand.u32 %v710, 4294901760
        %712 = vmatpush1.msra.mxu0 %v711
        %v713 = vand.u32 %v422, 4294901760
        %v714 = vsub.f32 %v422, %v713
        %v715 = vand.u32 %v714, 4294901760
        %v716 = vsub.f32 %v714, %v715
        %v717 = vand.u32 %v716, 4294901760
        %718 = vmatprep.subr.mxu0 %v717
        %v719 = vand.u32 %v421, 4294901760
        %v720 = vsub.f32 %v421, %v719
        %v721 = vand.u32 %v720, 4294901760
        %v722 = vsub.f32 %v720, %v721
        %v723 = vand.u32 %v722, 4294901760
        %724 = vmatpush1.msra.mxu0 %v723
        %v725 = vand.u32 %v424, 4294901760
        %v726 = vsub.f32 %v424, %v725
        %v727 = vand.u32 %v726, 4294901760
        %v728 = vsub.f32 %v726, %v727
        %v729 = vand.u32 %v728, 4294901760
        %730 = vmatprep.subr.mxu0 %v729
        %v731 = vand.u32 %v423, 4294901760
        %v732 = vsub.f32 %v423, %v731
        %v733 = vand.u32 %v732, 4294901760
        %v734 = vsub.f32 %v732, %v733
        %v735 = vand.u32 %v734, 4294901760
        %736 = vmatpush1.msra.mxu0 %v735
        %737 = vmatprep.subr.mxu0 0.0
        %738 = vmatpush1.msra.mxu0 0.0
        %739 = vmatprep.subr.mxu0 0.0
        %740 = vmatpush1.msra.mxu0 0.0
        %741 = vmatprep.subr.mxu0 0.0
        %742 = vmatpush1.msra.mxu0 0.0
        %743 = vmatprep.subr.mxu0 0.0
        %744 = vmatpush1.msra.mxu0 0.0
        %745 = vmatprep.subr.mxu0 0.0
        %746 = vmatpush1.msra.mxu0 0.0
        %747 = vmatprep.subr.mxu0 0.0
        %748 = vmatpush1.msra.mxu0 0.0
        %749 = vmatprep.subr.mxu0 0.0
        %750 = vmatpush1.msra.mxu0 0.0
        %751 = vmatprep.subr.mxu0 0.0
        %752 = vmatpush1.msra.mxu0 0.0
        %753 = vmatprep.subr.mxu0 0.0
        %754 = vmatpush1.msra.mxu0 0.0
        %755 = vmatprep.subr.mxu0 0.0
        %756 = vmatpush1.msra.mxu0 0.0
        %757 = vmatprep.subr.mxu0 0.0
        %758 = vmatpush1.msra.mxu0 0.0
        %759 = vmatprep.subr.mxu0 0.0
        %760 = vmatpush1.msra.mxu0 0.0
        %761 = vmatprep.subr.mxu0 0.0
        %762 = vmatpush1.msra.mxu0 0.0
        %763 = vmatprep.subr.mxu0 0.0
        %764 = vmatpush1.msra.mxu0 0.0
        %765 = vmatprep.subr.mxu0 0.0
        %766 = vmatpush1.msra.mxu0 0.0
        %767 = vmatprep.subr.mxu0 0.0
        %768 = vmatpush1.msra.mxu0 0.0
        %769 = vmatprep.mubr.f32.mxu0 0.0
        %v770 = vand.u32 %v392, 4294901760
        %771 = vmatmul.mubr.f32.gmra.mrb[0].mxu0 %v770
        %v772 = vpop.f32.mrb[0].mxu0
        %v773 = vadd.f32 %v541, %v772
        %v774 = vpop.f32.mrb[0].mxu0
        %v775 = vadd.f32 %v543, %v774
        %776 = vdwg.mxu0
        %v777 = vand.u32 %v394, 4294901760
        %v778 = vsub.f32 %v394, %v777
        %779 = vmatprep.subr.mxu0 %v778
        %v780 = vand.u32 %v393, 4294901760
        %v781 = vsub.f32 %v393, %v780
        %782 = vmatpush1.msra.mxu0 %v781
        %v783 = vand.u32 %v396, 4294901760
        %v784 = vsub.f32 %v396, %v783
        %785 = vmatprep.subr.mxu0 %v784
        %v786 = vand.u32 %v395, 4294901760
        %v787 = vsub.f32 %v395, %v786
        %788 = vmatpush1.msra.mxu0 %v787
        %v789 = vand.u32 %v398, 4294901760
        %v790 = vsub.f32 %v398, %v789
        %791 = vmatprep.subr.mxu0 %v790
        %v792 = vand.u32 %v397, 4294901760
        %v793 = vsub.f32 %v397, %v792
        %794 = vmatpush1.msra.mxu0 %v793
        %v795 = vand.u32 %v400, 4294901760
        %v796 = vsub.f32 %v400, %v795
        %797 = vmatprep.subr.mxu0 %v796
        %v798 = vand.u32 %v399, 4294901760
        %v799 = vsub.f32 %v399, %v798
        %800 = vmatpush1.msra.mxu0 %v799
        %v801 = vand.u32 %v402, 4294901760
        %v802 = vsub.f32 %v402, %v801
        %803 = vmatprep.subr.mxu0 %v802
        %v804 = vand.u32 %v401, 4294901760
        %v805 = vsub.f32 %v401, %v804
        %806 = vmatpush1.msra.mxu0 %v805
        %v807 = vand.u32 %v404, 4294901760
        %v808 = vsub.f32 %v404, %v807
        %809 = vmatprep.subr.mxu0 %v808
        %v810 = vand.u32 %v403, 4294901760
        %v811 = vsub.f32 %v403, %v810
        %812 = vmatpush1.msra.mxu0 %v811
        %v813 = vand.u32 %v406, 4294901760
        %v814 = vsub.f32 %v406, %v813
        %815 = vmatprep.subr.mxu0 %v814
        %v816 = vand.u32 %v405, 4294901760
        %v817 = vsub.f32 %v405, %v816
        %818 = vmatpush1.msra.mxu0 %v817
        %v819 = vand.u32 %v408, 4294901760
        %v820 = vsub.f32 %v408, %v819
        %821 = vmatprep.subr.mxu0 %v820
        %v822 = vand.u32 %v407, 4294901760
        %v823 = vsub.f32 %v407, %v822
        %824 = vmatpush1.msra.mxu0 %v823
        %v825 = vand.u32 %v410, 4294901760
        %v826 = vsub.f32 %v410, %v825
        %827 = vmatprep.subr.mxu0 %v826
        %v828 = vand.u32 %v409, 4294901760
        %v829 = vsub.f32 %v409, %v828
        %830 = vmatpush1.msra.mxu0 %v829
        %v831 = vand.u32 %v412, 4294901760
        %v832 = vsub.f32 %v412, %v831
        %833 = vmatprep.subr.mxu0 %v832
        %v834 = vand.u32 %v411, 4294901760
        %v835 = vsub.f32 %v411, %v834
        %836 = vmatpush1.msra.mxu0 %v835
        %v837 = vand.u32 %v414, 4294901760
        %v838 = vsub.f32 %v414, %v837
        %839 = vmatprep.subr.mxu0 %v838
        %v840 = vand.u32 %v413, 4294901760
        %v841 = vsub.f32 %v413, %v840
        %842 = vmatpush1.msra.mxu0 %v841
        %v843 = vand.u32 %v416, 4294901760
        %v844 = vsub.f32 %v416, %v843
        %845 = vmatprep.subr.mxu0 %v844
        %v846 = vand.u32 %v415, 4294901760
        %v847 = vsub.f32 %v415, %v846
        %848 = vmatpush1.msra.mxu0 %v847
        %v849 = vand.u32 %v418, 4294901760
        %v850 = vsub.f32 %v418, %v849
        %851 = vmatprep.subr.mxu0 %v850
        %v852 = vand.u32 %v417, 4294901760
        %v853 = vsub.f32 %v417, %v852
        %854 = vmatpush1.msra.mxu0 %v853
        %v855 = vand.u32 %v420, 4294901760
        %v856 = vsub.f32 %v420, %v855
        %857 = vmatprep.subr.mxu0 %v856
        %v858 = vand.u32 %v419, 4294901760
        %v859 = vsub.f32 %v419, %v858
        %860 = vmatpush1.msra.mxu0 %v859
        %v861 = vand.u32 %v422, 4294901760
        %v862 = vsub.f32 %v422, %v861
        %863 = vmatprep.subr.mxu0 %v862
        %v864 = vand.u32 %v421, 4294901760
        %v865 = vsub.f32 %v421, %v864
        %866 = vmatpush1.msra.mxu0 %v865
        %v867 = vand.u32 %v424, 4294901760
        %v868 = vsub.f32 %v424, %v867
        %869 = vmatprep.subr.mxu0 %v868
        %v870 = vand.u32 %v423, 4294901760
        %v871 = vsub.f32 %v423, %v870
        %872 = vmatpush1.msra.mxu0 %v871
        %873 = vmatprep.subr.mxu0 0.0
        %874 = vmatpush1.msra.mxu0 0.0
        %875 = vmatprep.subr.mxu0 0.0
        %876 = vmatpush1.msra.mxu0 0.0
        %877 = vmatprep.subr.mxu0 0.0
        %878 = vmatpush1.msra.mxu0 0.0
        %879 = vmatprep.subr.mxu0 0.0
        %880 = vmatpush1.msra.mxu0 0.0
        %881 = vmatprep.subr.mxu0 0.0
        %882 = vmatpush1.msra.mxu0 0.0
        %883 = vmatprep.subr.mxu0 0.0
        %884 = vmatpush1.msra.mxu0 0.0
        %885 = vmatprep.subr.mxu0 0.0
        %886 = vmatpush1.msra.mxu0 0.0
        %887 = vmatprep.subr.mxu0 0.0
        %888 = vmatpush1.msra.mxu0 0.0
        %889 = vmatprep.subr.mxu0 0.0
        %890 = vmatpush1.msra.mxu0 0.0
        %891 = vmatprep.subr.mxu0 0.0
        %892 = vmatpush1.msra.mxu0 0.0
        %893 = vmatprep.subr.mxu0 0.0
        %894 = vmatpush1.msra.mxu0 0.0
        %895 = vmatprep.subr.mxu0 0.0
        %896 = vmatpush1.msra.mxu0 0.0
        %897 = vmatprep.subr.mxu0 0.0
        %898 = vmatpush1.msra.mxu0 0.0
        %899 = vmatprep.subr.mxu0 0.0
        %900 = vmatpush1.msra.mxu0 0.0
        %901 = vmatprep.subr.mxu0 0.0
        %902 = vmatpush1.msra.mxu0 0.0
        %903 = vmatprep.subr.mxu0 0.0
        %904 = vmatpush1.msra.mxu0 0.0
        %905 = vmatprep.mubr.f32.mxu0 0.0
        %v906 = vand.u32 %v392, 4294901760
        %v907 = vsub.f32 %v392, %v906
        %908 = vmatmul.mubr.f32.gmra.mrb[0].mxu0 %v907
        %v909 = vpop.f32.mrb[0].mxu0
        %v910 = vadd.f32 %v773, %v909
        %v911 = vpop.f32.mrb[0].mxu0
        %v912 = vadd.f32 %v775, %v911
        %913 = vdwg.mxu0
        %v914 = vand.u32 %v394, 4294901760
        %915 = vmatprep.subr.mxu0 %v914
        %v916 = vand.u32 %v393, 4294901760
        %917 = vmatpush1.msra.mxu0 %v916
        %v918 = vand.u32 %v396, 4294901760
        %919 = vmatprep.subr.mxu0 %v918
        %v920 = vand.u32 %v395, 4294901760
        %921 = vmatpush1.msra.mxu0 %v920
        %v922 = vand.u32 %v398, 4294901760
        %923 = vmatprep.subr.mxu0 %v922
        %v924 = vand.u32 %v397, 4294901760
        %925 = vmatpush1.msra.mxu0 %v924
        %v926 = vand.u32 %v400, 4294901760
        %927 = vmatprep.subr.mxu0 %v926
        %v928 = vand.u32 %v399, 4294901760
        %929 = vmatpush1.msra.mxu0 %v928
        %v930 = vand.u32 %v402, 4294901760
        %931 = vmatprep.subr.mxu0 %v930
        %v932 = vand.u32 %v401, 4294901760
        %933 = vmatpush1.msra.mxu0 %v932
        %v934 = vand.u32 %v404, 4294901760
        %935 = vmatprep.subr.mxu0 %v934
        %v936 = vand.u32 %v403, 4294901760
        %937 = vmatpush1.msra.mxu0 %v936
        %v938 = vand.u32 %v406, 4294901760
        %939 = vmatprep.subr.mxu0 %v938
        %v940 = vand.u32 %v405, 4294901760
        %941 = vmatpush1.msra.mxu0 %v940
        %v942 = vand.u32 %v408, 4294901760
        %943 = vmatprep.subr.mxu0 %v942
        %v944 = vand.u32 %v407, 4294901760
        %945 = vmatpush1.msra.mxu0 %v944
        %v946 = vand.u32 %v410, 4294901760
        %947 = vmatprep.subr.mxu0 %v946
        %v948 = vand.u32 %v409, 4294901760
        %949 = vmatpush1.msra.mxu0 %v948
        %v950 = vand.u32 %v412, 4294901760
        %951 = vmatprep.subr.mxu0 %v950
        %v952 = vand.u32 %v411, 4294901760
        %953 = vmatpush1.msra.mxu0 %v952
        %v954 = vand.u32 %v414, 4294901760
        %955 = vmatprep.subr.mxu0 %v954
        %v956 = vand.u32 %v413, 4294901760
        %957 = vmatpush1.msra.mxu0 %v956
        %v958 = vand.u32 %v416, 4294901760
        %959 = vmatprep.subr.mxu0 %v958
        %v960 = vand.u32 %v415, 4294901760
        %961 = vmatpush1.msra.mxu0 %v960
        %v962 = vand.u32 %v418, 4294901760
        %963 = vmatprep.subr.mxu0 %v962
        %v964 = vand.u32 %v417, 4294901760
        %965 = vmatpush1.msra.mxu0 %v964
        %v966 = vand.u32 %v420, 4294901760
        %967 = vmatprep.subr.mxu0 %v966
        %v968 = vand.u32 %v419, 4294901760
        %969 = vmatpush1.msra.mxu0 %v968
        %v970 = vand.u32 %v422, 4294901760
        %971 = vmatprep.subr.mxu0 %v970
        %v972 = vand.u32 %v421, 4294901760
        %973 = vmatpush1.msra.mxu0 %v972
        %v974 = vand.u32 %v424, 4294901760
        %975 = vmatprep.subr.mxu0 %v974
        %v976 = vand.u32 %v423, 4294901760
        %977 = vmatpush1.msra.mxu0 %v976
        %978 = vmatprep.subr.mxu0 0.0
        %979 = vmatpush1.msra.mxu0 0.0
        %980 = vmatprep.subr.mxu0 0.0
        %981 = vmatpush1.msra.mxu0 0.0
        %982 = vmatprep.subr.mxu0 0.0
        %983 = vmatpush1.msra.mxu0 0.0
        %984 = vmatprep.subr.mxu0 0.0
        %985 = vmatpush1.msra.mxu0 0.0
        %986 = vmatprep.subr.mxu0 0.0
        %987 = vmatpush1.msra.mxu0 0.0
        %988 = vmatprep.subr.mxu0 0.0
        %989 = vmatpush1.msra.mxu0 0.0
        %990 = vmatprep.subr.mxu0 0.0
        %991 = vmatpush1.msra.mxu0 0.0
        %992 = vmatprep.subr.mxu0 0.0
        %993 = vmatpush1.msra.mxu0 0.0
        %994 = vmatprep.subr.mxu0 0.0
        %995 = vmatpush1.msra.mxu0 0.0
        %996 = vmatprep.subr.mxu0 0.0
        %997 = vmatpush1.msra.mxu0 0.0
        %998 = vmatprep.subr.mxu0 0.0
        %999 = vmatpush1.msra.mxu0 0.0
        %1000 = vmatprep.subr.mxu0 0.0
        %1001 = vmatpush1.msra.mxu0 0.0
        %1002 = vmatprep.subr.mxu0 0.0
        %1003 = vmatpush1.msra.mxu0 0.0
        %1004 = vmatprep.subr.mxu0 0.0
        %1005 = vmatpush1.msra.mxu0 0.0
        %1006 = vmatprep.subr.mxu0 0.0
        %1007 = vmatpush1.msra.mxu0 0.0
        %1008 = vmatprep.subr.mxu0 0.0
        %1009 = vmatpush1.msra.mxu0 0.0
        %1010 = vmatprep.mubr.f32.mxu0 0.0
        %v1011 = vand.u32 %v392, 4294901760
        %v1012 = vsub.f32 %v392, %v1011
        %v1013 = vand.u32 %v1012, 4294901760
        %1014 = vmatmul.mubr.f32.gmra.mrb[0].mxu0 %v1013
        %v1015 = vpop.f32.mrb[0].mxu0
        %v1016 = vadd.f32 %v910, %v1015
        %v1017 = vpop.f32.mrb[0].mxu0
        %v1018 = vadd.f32 %v912, %v1017
        %1019 = vdwg.mxu0
        %v1020 = vand.u32 %v394, 4294901760
        %v1021 = vsub.f32 %v394, %v1020
        %v1022 = vand.u32 %v1021, 4294901760
        %1023 = vmatprep.subr.mxu0 %v1022
        %v1024 = vand.u32 %v393, 4294901760
        %v1025 = vsub.f32 %v393, %v1024
        %v1026 = vand.u32 %v1025, 4294901760
        %1027 = vmatpush1.msra.mxu0 %v1026
        %v1028 = vand.u32 %v396, 4294901760
        %v1029 = vsub.f32 %v396, %v1028
        %v1030 = vand.u32 %v1029, 4294901760
        %1031 = vmatprep.subr.mxu0 %v1030
        %v1032 = vand.u32 %v395, 4294901760
        %v1033 = vsub.f32 %v395, %v1032
        %v1034 = vand.u32 %v1033, 4294901760
        %1035 = vmatpush1.msra.mxu0 %v1034
        %v1036 = vand.u32 %v398, 4294901760
        %v1037 = vsub.f32 %v398, %v1036
        %v1038 = vand.u32 %v1037, 4294901760
        %1039 = vmatprep.subr.mxu0 %v1038
        %v1040 = vand.u32 %v397, 4294901760
        %v1041 = vsub.f32 %v397, %v1040
        %v1042 = vand.u32 %v1041, 4294901760
        %1043 = vmatpush1.msra.mxu0 %v1042
        %v1044 = vand.u32 %v400, 4294901760
        %v1045 = vsub.f32 %v400, %v1044
        %v1046 = vand.u32 %v1045, 4294901760
        %1047 = vmatprep.subr.mxu0 %v1046
        %v1048 = vand.u32 %v399, 4294901760
        %v1049 = vsub.f32 %v399, %v1048
        %v1050 = vand.u32 %v1049, 4294901760
        %1051 = vmatpush1.msra.mxu0 %v1050
        %v1052 = vand.u32 %v402, 4294901760
        %v1053 = vsub.f32 %v402, %v1052
        %v1054 = vand.u32 %v1053, 4294901760
        %1055 = vmatprep.subr.mxu0 %v1054
        %v1056 = vand.u32 %v401, 4294901760
        %v1057 = vsub.f32 %v401, %v1056
        %v1058 = vand.u32 %v1057, 4294901760
        %1059 = vmatpush1.msra.mxu0 %v1058
        %v1060 = vand.u32 %v404, 4294901760
        %v1061 = vsub.f32 %v404, %v1060
        %v1062 = vand.u32 %v1061, 4294901760
        %1063 = vmatprep.subr.mxu0 %v1062
        %v1064 = vand.u32 %v403, 4294901760
        %v1065 = vsub.f32 %v403, %v1064
        %v1066 = vand.u32 %v1065, 4294901760
        %1067 = vmatpush1.msra.mxu0 %v1066
        %v1068 = vand.u32 %v406, 4294901760
        %v1069 = vsub.f32 %v406, %v1068
        %v1070 = vand.u32 %v1069, 4294901760
        %1071 = vmatprep.subr.mxu0 %v1070
        %v1072 = vand.u32 %v405, 4294901760
        %v1073 = vsub.f32 %v405, %v1072
        %v1074 = vand.u32 %v1073, 4294901760
        %1075 = vmatpush1.msra.mxu0 %v1074
        %v1076 = vand.u32 %v408, 4294901760
        %v1077 = vsub.f32 %v408, %v1076
        %v1078 = vand.u32 %v1077, 4294901760
        %1079 = vmatprep.subr.mxu0 %v1078
        %v1080 = vand.u32 %v407, 4294901760
        %v1081 = vsub.f32 %v407, %v1080
        %v1082 = vand.u32 %v1081, 4294901760
        %1083 = vmatpush1.msra.mxu0 %v1082
        %v1084 = vand.u32 %v410, 4294901760
        %v1085 = vsub.f32 %v410, %v1084
        %v1086 = vand.u32 %v1085, 4294901760
        %1087 = vmatprep.subr.mxu0 %v1086
        %v1088 = vand.u32 %v409, 4294901760
        %v1089 = vsub.f32 %v409, %v1088
        %v1090 = vand.u32 %v1089, 4294901760
        %1091 = vmatpush1.msra.mxu0 %v1090
        %v1092 = vand.u32 %v412, 4294901760
        %v1093 = vsub.f32 %v412, %v1092
        %v1094 = vand.u32 %v1093, 4294901760
        %1095 = vmatprep.subr.mxu0 %v1094
        %v1096 = vand.u32 %v411, 4294901760
        %v1097 = vsub.f32 %v411, %v1096
        %v1098 = vand.u32 %v1097, 4294901760
        %1099 = vmatpush1.msra.mxu0 %v1098
        %v1100 = vand.u32 %v414, 4294901760
        %v1101 = vsub.f32 %v414, %v1100
        %v1102 = vand.u32 %v1101, 4294901760
        %1103 = vmatprep.subr.mxu0 %v1102
        %v1104 = vand.u32 %v413, 4294901760
        %v1105 = vsub.f32 %v413, %v1104
        %v1106 = vand.u32 %v1105, 4294901760
        %1107 = vmatpush1.msra.mxu0 %v1106
        %v1108 = vand.u32 %v416, 4294901760
        %v1109 = vsub.f32 %v416, %v1108
        %v1110 = vand.u32 %v1109, 4294901760
        %1111 = vmatprep.subr.mxu0 %v1110
        %v1112 = vand.u32 %v415, 4294901760
        %v1113 = vsub.f32 %v415, %v1112
        %v1114 = vand.u32 %v1113, 4294901760
        %1115 = vmatpush1.msra.mxu0 %v1114
        %v1116 = vand.u32 %v418, 4294901760
        %v1117 = vsub.f32 %v418, %v1116
        %v1118 = vand.u32 %v1117, 4294901760
        %1119 = vmatprep.subr.mxu0 %v1118
        %v1120 = vand.u32 %v417, 4294901760
        %v1121 = vsub.f32 %v417, %v1120
        %v1122 = vand.u32 %v1121, 4294901760
        %1123 = vmatpush1.msra.mxu0 %v1122
        %v1124 = vand.u32 %v420, 4294901760
        %v1125 = vsub.f32 %v420, %v1124
        %v1126 = vand.u32 %v1125, 4294901760
        %1127 = vmatprep.subr.mxu0 %v1126
        %v1128 = vand.u32 %v419, 4294901760
        %v1129 = vsub.f32 %v419, %v1128
        %v1130 = vand.u32 %v1129, 4294901760
        %1131 = vmatpush1.msra.mxu0 %v1130
        %v1132 = vand.u32 %v422, 4294901760
        %v1133 = vsub.f32 %v422, %v1132
        %v1134 = vand.u32 %v1133, 4294901760
        %1135 = vmatprep.subr.mxu0 %v1134
        %v1136 = vand.u32 %v421, 4294901760
        %v1137 = vsub.f32 %v421, %v1136
        %v1138 = vand.u32 %v1137, 4294901760
        %1139 = vmatpush1.msra.mxu0 %v1138
        %v1140 = vand.u32 %v424, 4294901760
        %v1141 = vsub.f32 %v424, %v1140
        %v1142 = vand.u32 %v1141, 4294901760
        %1143 = vmatprep.subr.mxu0 %v1142
        %v1144 = vand.u32 %v423, 4294901760
        %v1145 = vsub.f32 %v423, %v1144
        %v1146 = vand.u32 %v1145, 4294901760
        %1147 = vmatpush1.msra.mxu0 %v1146
        %1148 = vmatprep.subr.mxu0 0.0
        %1149 = vmatpush1.msra.mxu0 0.0
        %1150 = vmatprep.subr.mxu0 0.0
        %1151 = vmatpush1.msra.mxu0 0.0
        %1152 = vmatprep.subr.mxu0 0.0
        %1153 = vmatpush1.msra.mxu0 0.0
        %1154 = vmatprep.subr.mxu0 0.0
        %1155 = vmatpush1.msra.mxu0 0.0
        %1156 = vmatprep.subr.mxu0 0.0
        %1157 = vmatpush1.msra.mxu0 0.0
        %1158 = vmatprep.subr.mxu0 0.0
        %1159 = vmatpush1.msra.mxu0 0.0
        %1160 = vmatprep.subr.mxu0 0.0
        %1161 = vmatpush1.msra.mxu0 0.0
        %1162 = vmatprep.subr.mxu0 0.0
        %1163 = vmatpush1.msra.mxu0 0.0
        %1164 = vmatprep.subr.mxu0 0.0
        %1165 = vmatpush1.msra.mxu0 0.0
        %1166 = vmatprep.subr.mxu0 0.0
        %1167 = vmatpush1.msra.mxu0 0.0
        %1168 = vmatprep.subr.mxu0 0.0
        %1169 = vmatpush1.msra.mxu0 0.0
        %1170 = vmatprep.subr.mxu0 0.0
        %1171 = vmatpush1.msra.mxu0 0.0
        %1172 = vmatprep.subr.mxu0 0.0
        %1173 = vmatpush1.msra.mxu0 0.0
        %1174 = vmatprep.subr.mxu0 0.0
        %1175 = vmatpush1.msra.mxu0 0.0
        %1176 = vmatprep.subr.mxu0 0.0
        %1177 = vmatpush1.msra.mxu0 0.0
        %1178 = vmatprep.subr.mxu0 0.0
        %1179 = vmatpush1.msra.mxu0 0.0
        %1180 = vmatprep.mubr.f32.mxu0 0.0
        %v1181 = vand.u32 %v392, 4294901760
        %1182 = vmatmul.mubr.f32.gmra.mrb[0].mxu0 %v1181
        %v1183 = vpop.f32.mrb[0].mxu0
        %v1184 = vadd.f32 %v1016, %v1183
        %v1185 = vpop.f32.mrb[0].mxu0
        %v1186 = vadd.f32 %v1018, %v1185
        %1187 = vdwg.mxu0
        %v1188 = vand.u32 %v394, 4294901760
        %1189 = vmatprep.subr.mxu0 %v1188
        %v1190 = vand.u32 %v393, 4294901760
        %1191 = vmatpush1.msra.mxu0 %v1190
        %v1192 = vand.u32 %v396, 4294901760
        %1193 = vmatprep.subr.mxu0 %v1192
        %v1194 = vand.u32 %v395, 4294901760
        %1195 = vmatpush1.msra.mxu0 %v1194
        %v1196 = vand.u32 %v398, 4294901760
        %1197 = vmatprep.subr.mxu0 %v1196
        %v1198 = vand.u32 %v397, 4294901760
        %1199 = vmatpush1.msra.mxu0 %v1198
        %v1200 = vand.u32 %v400, 4294901760
        %1201 = vmatprep.subr.mxu0 %v1200
        %v1202 = vand.u32 %v399, 4294901760
        %1203 = vmatpush1.msra.mxu0 %v1202
        %v1204 = vand.u32 %v402, 4294901760
        %1205 = vmatprep.subr.mxu0 %v1204
        %v1206 = vand.u32 %v401, 4294901760
        %1207 = vmatpush1.msra.mxu0 %v1206
        %v1208 = vand.u32 %v404, 4294901760
        %1209 = vmatprep.subr.mxu0 %v1208
        %v1210 = vand.u32 %v403, 4294901760
        %1211 = vmatpush1.msra.mxu0 %v1210
        %v1212 = vand.u32 %v406, 4294901760
        %1213 = vmatprep.subr.mxu0 %v1212
        %v1214 = vand.u32 %v405, 4294901760
        %1215 = vmatpush1.msra.mxu0 %v1214
        %v1216 = vand.u32 %v408, 4294901760
        %1217 = vmatprep.subr.mxu0 %v1216
        %v1218 = vand.u32 %v407, 4294901760
        %1219 = vmatpush1.msra.mxu0 %v1218
        %v1220 = vand.u32 %v410, 4294901760
        %1221 = vmatprep.subr.mxu0 %v1220
        %v1222 = vand.u32 %v409, 4294901760
        %1223 = vmatpush1.msra.mxu0 %v1222
        %v1224 = vand.u32 %v412, 4294901760
        %1225 = vmatprep.subr.mxu0 %v1224
        %v1226 = vand.u32 %v411, 4294901760
        %1227 = vmatpush1.msra.mxu0 %v1226
        %v1228 = vand.u32 %v414, 4294901760
        %1229 = vmatprep.subr.mxu0 %v1228
        %v1230 = vand.u32 %v413, 4294901760
        %1231 = vmatpush1.msra.mxu0 %v1230
        %v1232 = vand.u32 %v416, 4294901760
        %1233 = vmatprep.subr.mxu0 %v1232
        %v1234 = vand.u32 %v415, 4294901760
        %1235 = vmatpush1.msra.mxu0 %v1234
        %v1236 = vand.u32 %v418, 4294901760
        %1237 = vmatprep.subr.mxu0 %v1236
        %v1238 = vand.u32 %v417, 4294901760
        %1239 = vmatpush1.msra.mxu0 %v1238
        %v1240 = vand.u32 %v420, 4294901760
        %1241 = vmatprep.subr.mxu0 %v1240
        %v1242 = vand.u32 %v419, 4294901760
        %1243 = vmatpush1.msra.mxu0 %v1242
        %v1244 = vand.u32 %v422, 4294901760
        %1245 = vmatprep.subr.mxu0 %v1244
        %v1246 = vand.u32 %v421, 4294901760
        %1247 = vmatpush1.msra.mxu0 %v1246
        %v1248 = vand.u32 %v424, 4294901760
        %1249 = vmatprep.subr.mxu0 %v1248
        %v1250 = vand.u32 %v423, 4294901760
        %1251 = vmatpush1.msra.mxu0 %v1250
        %1252 = vmatprep.subr.mxu0 0.0
        %1253 = vmatpush1.msra.mxu0 0.0
        %1254 = vmatprep.subr.mxu0 0.0
        %1255 = vmatpush1.msra.mxu0 0.0
        %1256 = vmatprep.subr.mxu0 0.0
        %1257 = vmatpush1.msra.mxu0 0.0
        %1258 = vmatprep.subr.mxu0 0.0
        %1259 = vmatpush1.msra.mxu0 0.0
        %1260 = vmatprep.subr.mxu0 0.0
        %1261 = vmatpush1.msra.mxu0 0.0
        %1262 = vmatprep.subr.mxu0 0.0
        %1263 = vmatpush1.msra.mxu0 0.0
        %1264 = vmatprep.subr.mxu0 0.0
        %1265 = vmatpush1.msra.mxu0 0.0
        %1266 = vmatprep.subr.mxu0 0.0
        %1267 = vmatpush1.msra.mxu0 0.0
        %1268 = vmatprep.subr.mxu0 0.0
        %1269 = vmatpush1.msra.mxu0 0.0
        %1270 = vmatprep.subr.mxu0 0.0
        %1271 = vmatpush1.msra.mxu0 0.0
        %1272 = vmatprep.subr.mxu0 0.0
        %1273 = vmatpush1.msra.mxu0 0.0
        %1274 = vmatprep.subr.mxu0 0.0
        %1275 = vmatpush1.msra.mxu0 0.0
        %1276 = vmatprep.subr.mxu0 0.0
        %1277 = vmatpush1.msra.mxu0 0.0
        %1278 = vmatprep.subr.mxu0 0.0
        %1279 = vmatpush1.msra.mxu0 0.0
        %1280 = vmatprep.subr.mxu0 0.0
        %1281 = vmatpush1.msra.mxu0 0.0
        %1282 = vmatprep.subr.mxu0 0.0
        %1283 = vmatpush1.msra.mxu0 0.0
        %1284 = vmatprep.mubr.f32.mxu0 0.0
        %v1285 = vand.u32 %v392, 4294901760
        %1286 = vmatmul.mubr.f32.gmra.mrb[0].mxu0 %v1285
        %v1287 = vpop.f32.mrb[0].mxu0
        %v1288 = vadd.f32 %v1184, %v1287
        %v1289 = vpop.f32.mrb[0].mxu0
        %v1290 = vadd.f32 %v1186, %v1289
        %1291 = vdwg.mxu0
        %v1292 = vmul.f32 %v1288, 0.5
        %v1293 = vmul.f32 %v1290, 0.5
        %v1294 = vmul.f32 %v1288, 0.70710677
        %v1295 = vmul.f32 %v1290, 0.70710677
        %v1296 = verf.f32.pop %v1294
        %v1297 = verf.f32.pop %v1295
        %v1298 = vadd.f32 %v1296, 1.0
        %v1299 = vadd.f32 %v1297, 1.0
        %v1300 = vmul.f32 %v1292, %v1298
        %v1301 = vmul.f32 %v1293, %v1299
        %v1302 = vld [vmem:[%s379] sm:$0xff]
        %v1303 = vld [vmem:[#allocation8] sm:$0xff]
        %v1304 = vld [vmem:[#allocation8 + $0x8] sm:$0xff]
        %v1305 = vld [vmem:[#allocation8 + $0x10] sm:$0xff]
        %v1306 = vld [vmem:[#allocation8 + $0x18] sm:$0xff]
        %v1307 = vld [vmem:[#allocation8 + $0x20] sm:$0xff]
        %v1308 = vld [vmem:[#allocation8 + $0x28] sm:$0xff]
        %v1309 = vld [vmem:[#allocation8 + $0x30] sm:$0xff]
        %v1310 = vld [vmem:[#allocation8 + $0x38] sm:$0xff]
        %v1311 = vld [vmem:[#allocation8 + $0x40] sm:$0xff]
        %v1312 = vld [vmem:[#allocation8 + $0x48] sm:$0xff]
        %v1313 = vld [vmem:[#allocation8 + $0x50] sm:$0xff]
        %v1314 = vld [vmem:[#allocation8 + $0x58] sm:$0xff]
        %v1315 = vld [vmem:[#allocation8 + $0x60] sm:$0xff]
        %v1316 = vld [vmem:[#allocation8 + $0x68] sm:$0xff]
        %v1317 = vld [vmem:[#allocation8 + $0x70] sm:$0xff]
        %v1318 = vld [vmem:[#allocation8 + $0x78] sm:$0xff]
        %v1319 = vld [vmem:[#allocation8 + $0x80] sm:$0xff]
        %v1320 = vld [vmem:[#allocation8 + $0x88] sm:$0xff]
        %v1321 = vld [vmem:[#allocation8 + $0x90] sm:$0xff]
        %v1322 = vld [vmem:[#allocation8 + $0x98] sm:$0xff]
        %v1323 = vld [vmem:[#allocation8 + $0xa0] sm:$0xff]
        %v1324 = vld [vmem:[#allocation8 + $0xa8] sm:$0xff]
        %v1325 = vld [vmem:[#allocation8 + $0xb0] sm:$0xff]
        %v1326 = vld [vmem:[#allocation8 + $0xb8] sm:$0xff]
        %v1327 = vld [vmem:[#allocation8 + $0xc0] sm:$0xff]
        %v1328 = vld [vmem:[#allocation8 + $0xc8] sm:$0xff]
        %v1329 = vld [vmem:[#allocation8 + $0xd0] sm:$0xff]
        %v1330 = vld [vmem:[#allocation8 + $0xd8] sm:$0xff]
        %v1331 = vld [vmem:[#allocation8 + $0xe0] sm:$0xff]
        %v1332 = vld [vmem:[#allocation8 + $0xe8] sm:$0xff]
        %v1333 = vld [vmem:[#allocation8 + $0xf0] sm:$0xff]
        %v1334 = vld [vmem:[#allocation8 + $0xf8] sm:$0xff]
        %1335 = vmatprep.subr.mxu0 0.0
        %v1336 = vand.u32 %v1303, 4294901760
        %1337 = vmatpush1.msra.mxu0 %v1336
        %1338 = vmatprep.subr.mxu0 0.0
        %v1339 = vand.u32 %v1304, 4294901760
        %1340 = vmatpush1.msra.mxu0 %v1339
        %1341 = vmatprep.subr.mxu0 0.0
        %v1342 = vand.u32 %v1305, 4294901760
        %1343 = vmatpush1.msra.mxu0 %v1342
        %1344 = vmatprep.subr.mxu0 0.0
        %v1345 = vand.u32 %v1306, 4294901760
        %1346 = vmatpush1.msra.mxu0 %v1345
        %1347 = vmatprep.subr.mxu0 0.0
        %v1348 = vand.u32 %v1307, 4294901760
        %1349 = vmatpush1.msra.mxu0 %v1348
        %1350 = vmatprep.subr.mxu0 0.0
        %v1351 = vand.u32 %v1308, 4294901760
        %1352 = vmatpush1.msra.mxu0 %v1351
        %1353 = vmatprep.subr.mxu0 0.0
        %v1354 = vand.u32 %v1309, 4294901760
        %1355 = vmatpush1.msra.mxu0 %v1354
        %1356 = vmatprep.subr.mxu0 0.0
        %v1357 = vand.u32 %v1310, 4294901760
        %1358 = vmatpush1.msra.mxu0 %v1357
        %1359 = vmatprep.subr.mxu0 0.0
        %v1360 = vand.u32 %v1311, 4294901760
        %1361 = vmatpush1.msra.mxu0 %v1360
        %1362 = vmatprep.subr.mxu0 0.0
        %v1363 = vand.u32 %v1312, 4294901760
        %1364 = vmatpush1.msra.mxu0 %v1363
        %1365 = vmatprep.subr.mxu0 0.0
        %v1366 = vand.u32 %v1313, 4294901760
        %1367 = vmatpush1.msra.mxu0 %v1366
        %1368 = vmatprep.subr.mxu0 0.0
        %v1369 = vand.u32 %v1314, 4294901760
        %1370 = vmatpush1.msra.mxu0 %v1369
        %1371 = vmatprep.subr.mxu0 0.0
        %v1372 = vand.u32 %v1315, 4294901760
        %1373 = vmatpush1.msra.mxu0 %v1372
        %1374 = vmatprep.subr.mxu0 0.0
        %v1375 = vand.u32 %v1316, 4294901760
        %1376 = vmatpush1.msra.mxu0 %v1375
        %1377 = vmatprep.subr.mxu0 0.0
        %v1378 = vand.u32 %v1317, 4294901760
        %1379 = vmatpush1.msra.mxu0 %v1378
        %1380 = vmatprep.subr.mxu0 0.0
        %v1381 = vand.u32 %v1318, 4294901760
        %1382 = vmatpush1.msra.mxu0 %v1381
        %1383 = vmatprep.subr.mxu0 0.0
        %v1384 = vand.u32 %v1319, 4294901760
        %1385 = vmatpush1.msra.mxu0 %v1384
        %1386 = vmatprep.subr.mxu0 0.0
        %v1387 = vand.u32 %v1320, 4294901760
        %1388 = vmatpush1.msra.mxu0 %v1387
        %1389 = vmatprep.subr.mxu0 0.0
        %v1390 = vand.u32 %v1321, 4294901760
        %1391 = vmatpush1.msra.mxu0 %v1390
        %1392 = vmatprep.subr.mxu0 0.0
        %v1393 = vand.u32 %v1322, 4294901760
        %1394 = vmatpush1.msra.mxu0 %v1393
        %1395 = vmatprep.subr.mxu0 0.0
        %v1396 = vand.u32 %v1323, 4294901760
        %1397 = vmatpush1.msra.mxu0 %v1396
        %1398 = vmatprep.subr.mxu0 0.0
        %v1399 = vand.u32 %v1324, 4294901760
        %1400 = vmatpush1.msra.mxu0 %v1399
        %1401 = vmatprep.subr.mxu0 0.0
        %v1402 = vand.u32 %v1325, 4294901760
        %1403 = vmatpush1.msra.mxu0 %v1402
        %1404 = vmatprep.subr.mxu0 0.0
        %v1405 = vand.u32 %v1326, 4294901760
        %1406 = vmatpush1.msra.mxu0 %v1405
        %1407 = vmatprep.subr.mxu0 0.0
        %v1408 = vand.u32 %v1327, 4294901760
        %1409 = vmatpush1.msra.mxu0 %v1408
        %1410 = vmatprep.subr.mxu0 0.0
        %v1411 = vand.u32 %v1328, 4294901760
        %1412 = vmatpush1.msra.mxu0 %v1411
        %1413 = vmatprep.subr.mxu0 0.0
        %v1414 = vand.u32 %v1329, 4294901760
        %1415 = vmatpush1.msra.mxu0 %v1414
        %1416 = vmatprep.subr.mxu0 0.0
        %v1417 = vand.u32 %v1330, 4294901760
        %1418 = vmatpush1.msra.mxu0 %v1417
        %1419 = vmatprep.subr.mxu0 0.0
        %v1420 = vand.u32 %v1331, 4294901760
        %1421 = vmatpush1.msra.mxu0 %v1420
        %1422 = vmatprep.subr.mxu0 0.0
        %v1423 = vand.u32 %v1332, 4294901760
        %1424 = vmatpush1.msra.mxu0 %v1423
        %1425 = vmatprep.subr.mxu0 0.0
        %v1426 = vand.u32 %v1333, 4294901760
        %1427 = vmatpush1.msra.mxu0 %v1426
        %1428 = vmatprep.subr.mxu0 0.0
        %v1429 = vand.u32 %v1334, 4294901760
        %1430 = vmatpush1.msra.mxu0 %v1429
        %v1431 = vand.u32 %v1301, 4294901760
        %v1432 = vsub.f32 %v1301, %v1431
        %v1433 = vand.u32 %v1432, 4294901760
        %v1434 = vsub.f32 %v1432, %v1433
        %v1435 = vand.u32 %v1434, 4294901760
        %1436 = vmatprep.mubr.f32.mxu0 %v1435
        %v1437 = vand.u32 %v1300, 4294901760
        %v1438 = vsub.f32 %v1300, %v1437
        %v1439 = vand.u32 %v1438, 4294901760
        %v1440 = vsub.f32 %v1438, %v1439
        %v1441 = vand.u32 %v1440, 4294901760
        %1442 = vmatmul.mubr.f32.gmra.mrb[0].mxu0 %v1441
        %v1443 = vpop.f32.mrb[0].mxu0
        %v1444 = vadd.f32 0.0, %v1443
        %v1445 = vpop.f32.mrb[0].mxu0
        %1446 = vdwg.mxu0
        %1447 = vmatprep.subr.mxu0 0.0
        %v1448 = vand.u32 %v1303, 4294901760
        %v1449 = vsub.f32 %v1303, %v1448
        %v1450 = vand.u32 %v1449, 4294901760
        %v1451 = vsub.f32 %v1449, %v1450
        %v1452 = vand.u32 %v1451, 4294901760
        %1453 = vmatpush1.msra.mxu0 %v1452
        %1454 = vmatprep.subr.mxu0 0.0
        %v1455 = vand.u32 %v1304, 4294901760
        %v1456 = vsub.f32 %v1304, %v1455
        %v1457 = vand.u32 %v1456, 4294901760
        %v1458 = vsub.f32 %v1456, %v1457
        %v1459 = vand.u32 %v1458, 4294901760
        %1460 = vmatpush1.msra.mxu0 %v1459
        %1461 = vmatprep.subr.mxu0 0.0
        %v1462 = vand.u32 %v1305, 4294901760
        %v1463 = vsub.f32 %v1305, %v1462
        %v1464 = vand.u32 %v1463, 4294901760
        %v1465 = vsub.f32 %v1463, %v1464
        %v1466 = vand.u32 %v1465, 4294901760
        %1467 = vmatpush1.msra.mxu0 %v1466
        %1468 = vmatprep.subr.mxu0 0.0
        %v1469 = vand.u32 %v1306, 4294901760
        %v1470 = vsub.f32 %v1306, %v1469
        %v1471 = vand.u32 %v1470, 4294901760
        %v1472 = vsub.f32 %v1470, %v1471
        %v1473 = vand.u32 %v1472, 4294901760
        %1474 = vmatpush1.msra.mxu0 %v1473
        %1475 = vmatprep.subr.mxu0 0.0
        %v1476 = vand.u32 %v1307, 4294901760
        %v1477 = vsub.f32 %v1307, %v1476
        %v1478 = vand.u32 %v1477, 4294901760
        %v1479 = vsub.f32 %v1477, %v1478
        %v1480 = vand.u32 %v1479, 4294901760
        %1481 = vmatpush1.msra.mxu0 %v1480
        %1482 = vmatprep.subr.mxu0 0.0
        %v1483 = vand.u32 %v1308, 4294901760
        %v1484 = vsub.f32 %v1308, %v1483
        %v1485 = vand.u32 %v1484, 4294901760
        %v1486 = vsub.f32 %v1484, %v1485
        %v1487 = vand.u32 %v1486, 4294901760
        %1488 = vmatpush1.msra.mxu0 %v1487
        %1489 = vmatprep.subr.mxu0 0.0
        %v1490 = vand.u32 %v1309, 4294901760
        %v1491 = vsub.f32 %v1309, %v1490
        %v1492 = vand.u32 %v1491, 4294901760
        %v1493 = vsub.f32 %v1491, %v1492
        %v1494 = vand.u32 %v1493, 4294901760
        %1495 = vmatpush1.msra.mxu0 %v1494
        %1496 = vmatprep.subr.mxu0 0.0
        %v1497 = vand.u32 %v1310, 4294901760
        %v1498 = vsub.f32 %v1310, %v1497
        %v1499 = vand.u32 %v1498, 4294901760
        %v1500 = vsub.f32 %v1498, %v1499
        %v1501 = vand.u32 %v1500, 4294901760
        %1502 = vmatpush1.msra.mxu0 %v1501
        %1503 = vmatprep.subr.mxu0 0.0
        %v1504 = vand.u32 %v1311, 4294901760
        %v1505 = vsub.f32 %v1311, %v1504
        %v1506 = vand.u32 %v1505, 4294901760
        %v1507 = vsub.f32 %v1505, %v1506
        %v1508 = vand.u32 %v1507, 4294901760
        %1509 = vmatpush1.msra.mxu0 %v1508
        %1510 = vmatprep.subr.mxu0 0.0
        %v1511 = vand.u32 %v1312, 4294901760
        %v1512 = vsub.f32 %v1312, %v1511
        %v1513 = vand.u32 %v1512, 4294901760
        %v1514 = vsub.f32 %v1512, %v1513
        %v1515 = vand.u32 %v1514, 4294901760
        %1516 = vmatpush1.msra.mxu0 %v1515
        %1517 = vmatprep.subr.mxu0 0.0
        %v1518 = vand.u32 %v1313, 4294901760
        %v1519 = vsub.f32 %v1313, %v1518
        %v1520 = vand.u32 %v1519, 4294901760
        %v1521 = vsub.f32 %v1519, %v1520
        %v1522 = vand.u32 %v1521, 4294901760
        %1523 = vmatpush1.msra.mxu0 %v1522
        %1524 = vmatprep.subr.mxu0 0.0
        %v1525 = vand.u32 %v1314, 4294901760
        %v1526 = vsub.f32 %v1314, %v1525
        %v1527 = vand.u32 %v1526, 4294901760
        %v1528 = vsub.f32 %v1526, %v1527
        %v1529 = vand.u32 %v1528, 4294901760
        %1530 = vmatpush1.msra.mxu0 %v1529
        %1531 = vmatprep.subr.mxu0 0.0
        %v1532 = vand.u32 %v1315, 4294901760
        %v1533 = vsub.f32 %v1315, %v1532
        %v1534 = vand.u32 %v1533, 4294901760
        %v1535 = vsub.f32 %v1533, %v1534
        %v1536 = vand.u32 %v1535, 4294901760
        %1537 = vmatpush1.msra.mxu0 %v1536
        %1538 = vmatprep.subr.mxu0 0.0
        %v1539 = vand.u32 %v1316, 4294901760
        %v1540 = vsub.f32 %v1316, %v1539
        %v1541 = vand.u32 %v1540, 4294901760
        %v1542 = vsub.f32 %v1540, %v1541
        %v1543 = vand.u32 %v1542, 4294901760
        %1544 = vmatpush1.msra.mxu0 %v1543
        %1545 = vmatprep.subr.mxu0 0.0
        %v1546 = vand.u32 %v1317, 4294901760
        %v1547 = vsub.f32 %v1317, %v1546
        %v1548 = vand.u32 %v1547, 4294901760
        %v1549 = vsub.f32 %v1547, %v1548
        %v1550 = vand.u32 %v1549, 4294901760
        %1551 = vmatpush1.msra.mxu0 %v1550
        %1552 = vmatprep.subr.mxu0 0.0
        %v1553 = vand.u32 %v1318, 4294901760
        %v1554 = vsub.f32 %v1318, %v1553
        %v1555 = vand.u32 %v1554, 4294901760
        %v1556 = vsub.f32 %v1554, %v1555
        %v1557 = vand.u32 %v1556, 4294901760
        %1558 = vmatpush1.msra.mxu0 %v1557
        %1559 = vmatprep.subr.mxu0 0.0
        %v1560 = vand.u32 %v1319, 4294901760
        %v1561 = vsub.f32 %v1319, %v1560
        %v1562 = vand.u32 %v1561, 4294901760
        %v1563 = vsub.f32 %v1561, %v1562
        %v1564 = vand.u32 %v1563, 4294901760
        %1565 = vmatpush1.msra.mxu0 %v1564
        %1566 = vmatprep.subr.mxu0 0.0
        %v1567 = vand.u32 %v1320, 4294901760
        %v1568 = vsub.f32 %v1320, %v1567
        %v1569 = vand.u32 %v1568, 4294901760
        %v1570 = vsub.f32 %v1568, %v1569
        %v1571 = vand.u32 %v1570, 4294901760
        %1572 = vmatpush1.msra.mxu0 %v1571
        %1573 = vmatprep.subr.mxu0 0.0
        %v1574 = vand.u32 %v1321, 4294901760
        %v1575 = vsub.f32 %v1321, %v1574
        %v1576 = vand.u32 %v1575, 4294901760
        %v1577 = vsub.f32 %v1575, %v1576
        %v1578 = vand.u32 %v1577, 4294901760
        %1579 = vmatpush1.msra.mxu0 %v1578
        %1580 = vmatprep.subr.mxu0 0.0
        %v1581 = vand.u32 %v1322, 4294901760
        %v1582 = vsub.f32 %v1322, %v1581
        %v1583 = vand.u32 %v1582, 4294901760
        %v1584 = vsub.f32 %v1582, %v1583
        %v1585 = vand.u32 %v1584, 4294901760
        %1586 = vmatpush1.msra.mxu0 %v1585
        %1587 = vmatprep.subr.mxu0 0.0
        %v1588 = vand.u32 %v1323, 4294901760
        %v1589 = vsub.f32 %v1323, %v1588
        %v1590 = vand.u32 %v1589, 4294901760
        %v1591 = vsub.f32 %v1589, %v1590
        %v1592 = vand.u32 %v1591, 4294901760
        %1593 = vmatpush1.msra.mxu0 %v1592
        %1594 = vmatprep.subr.mxu0 0.0
        %v1595 = vand.u32 %v1324, 4294901760
        %v1596 = vsub.f32 %v1324, %v1595
        %v1597 = vand.u32 %v1596, 4294901760
        %v1598 = vsub.f32 %v1596, %v1597
        %v1599 = vand.u32 %v1598, 4294901760
        %1600 = vmatpush1.msra.mxu0 %v1599
        %1601 = vmatprep.subr.mxu0 0.0
        %v1602 = vand.u32 %v1325, 4294901760
        %v1603 = vsub.f32 %v1325, %v1602
        %v1604 = vand.u32 %v1603, 4294901760
        %v1605 = vsub.f32 %v1603, %v1604
        %v1606 = vand.u32 %v1605, 4294901760
        %1607 = vmatpush1.msra.mxu0 %v1606
        %1608 = vmatprep.subr.mxu0 0.0
        %v1609 = vand.u32 %v1326, 4294901760
        %v1610 = vsub.f32 %v1326, %v1609
        %v1611 = vand.u32 %v1610, 4294901760
        %v1612 = vsub.f32 %v1610, %v1611
        %v1613 = vand.u32 %v1612, 4294901760
        %1614 = vmatpush1.msra.mxu0 %v1613
        %1615 = vmatprep.subr.mxu0 0.0
        %v1616 = vand.u32 %v1327, 4294901760
        %v1617 = vsub.f32 %v1327, %v1616
        %v1618 = vand.u32 %v1617, 4294901760
        %v1619 = vsub.f32 %v1617, %v1618
        %v1620 = vand.u32 %v1619, 4294901760
        %1621 = vmatpush1.msra.mxu0 %v1620
        %1622 = vmatprep.subr.mxu0 0.0
        %v1623 = vand.u32 %v1328, 4294901760
        %v1624 = vsub.f32 %v1328, %v1623
        %v1625 = vand.u32 %v1624, 4294901760
        %v1626 = vsub.f32 %v1624, %v1625
        %v1627 = vand.u32 %v1626, 4294901760
        %1628 = vmatpush1.msra.mxu0 %v1627
        %1629 = vmatprep.subr.mxu0 0.0
        %v1630 = vand.u32 %v1329, 4294901760
        %v1631 = vsub.f32 %v1329, %v1630
        %v1632 = vand.u32 %v1631, 4294901760
        %v1633 = vsub.f32 %v1631, %v1632
        %v1634 = vand.u32 %v1633, 4294901760
        %1635 = vmatpush1.msra.mxu0 %v1634
        %1636 = vmatprep.subr.mxu0 0.0
        %v1637 = vand.u32 %v1330, 4294901760
        %v1638 = vsub.f32 %v1330, %v1637
        %v1639 = vand.u32 %v1638, 4294901760
        %v1640 = vsub.f32 %v1638, %v1639
        %v1641 = vand.u32 %v1640, 4294901760
        %1642 = vmatpush1.msra.mxu0 %v1641
        %1643 = vmatprep.subr.mxu0 0.0
        %v1644 = vand.u32 %v1331, 4294901760
        %v1645 = vsub.f32 %v1331, %v1644
        %v1646 = vand.u32 %v1645, 4294901760
        %v1647 = vsub.f32 %v1645, %v1646
        %v1648 = vand.u32 %v1647, 4294901760
        %1649 = vmatpush1.msra.mxu0 %v1648
        %1650 = vmatprep.subr.mxu0 0.0
        %v1651 = vand.u32 %v1332, 4294901760
        %v1652 = vsub.f32 %v1332, %v1651
        %v1653 = vand.u32 %v1652, 4294901760
        %v1654 = vsub.f32 %v1652, %v1653
        %v1655 = vand.u32 %v1654, 4294901760
        %1656 = vmatpush1.msra.mxu0 %v1655
        %1657 = vmatprep.subr.mxu0 0.0
        %v1658 = vand.u32 %v1333, 4294901760
        %v1659 = vsub.f32 %v1333, %v1658
        %v1660 = vand.u32 %v1659, 4294901760
        %v1661 = vsub.f32 %v1659, %v1660
        %v1662 = vand.u32 %v1661, 4294901760
        %1663 = vmatpush1.msra.mxu0 %v1662
        %1664 = vmatprep.subr.mxu0 0.0
        %v1665 = vand.u32 %v1334, 4294901760
        %v1666 = vsub.f32 %v1334, %v1665
        %v1667 = vand.u32 %v1666, 4294901760
        %v1668 = vsub.f32 %v1666, %v1667
        %v1669 = vand.u32 %v1668, 4294901760
        %1670 = vmatpush1.msra.mxu0 %v1669
        %v1671 = vand.u32 %v1301, 4294901760
        %1672 = vmatprep.mubr.f32.mxu0 %v1671
        %v1673 = vand.u32 %v1300, 4294901760
        %1674 = vmatmul.mubr.f32.gmra.mrb[0].mxu0 %v1673
        %v1675 = vpop.f32.mrb[0].mxu0
        %v1676 = vadd.f32 %v1444, %v1675
        %v1677 = vpop.f32.mrb[0].mxu0
        %1678 = vdwg.mxu0
        %1679 = vmatprep.subr.mxu0 0.0
        %v1680 = vand.u32 %v1303, 4294901760
        %v1681 = vsub.f32 %v1303, %v1680
        %1682 = vmatpush1.msra.mxu0 %v1681
        %1683 = vmatprep.subr.mxu0 0.0
        %v1684 = vand.u32 %v1304, 4294901760
        %v1685 = vsub.f32 %v1304, %v1684
        %1686 = vmatpush1.msra.mxu0 %v1685
        %1687 = vmatprep.subr.mxu0 0.0
        %v1688 = vand.u32 %v1305, 4294901760
        %v1689 = vsub.f32 %v1305, %v1688
        %1690 = vmatpush1.msra.mxu0 %v1689
        %1691 = vmatprep.subr.mxu0 0.0
        %v1692 = vand.u32 %v1306, 4294901760
        %v1693 = vsub.f32 %v1306, %v1692
        %1694 = vmatpush1.msra.mxu0 %v1693
        %1695 = vmatprep.subr.mxu0 0.0
        %v1696 = vand.u32 %v1307, 4294901760
        %v1697 = vsub.f32 %v1307, %v1696
        %1698 = vmatpush1.msra.mxu0 %v1697
        %1699 = vmatprep.subr.mxu0 0.0
        %v1700 = vand.u32 %v1308, 4294901760
        %v1701 = vsub.f32 %v1308, %v1700
        %1702 = vmatpush1.msra.mxu0 %v1701
        %1703 = vmatprep.subr.mxu0 0.0
        %v1704 = vand.u32 %v1309, 4294901760
        %v1705 = vsub.f32 %v1309, %v1704
        %1706 = vmatpush1.msra.mxu0 %v1705
        %1707 = vmatprep.subr.mxu0 0.0
        %v1708 = vand.u32 %v1310, 4294901760
        %v1709 = vsub.f32 %v1310, %v1708
        %1710 = vmatpush1.msra.mxu0 %v1709
        %1711 = vmatprep.subr.mxu0 0.0
        %v1712 = vand.u32 %v1311, 4294901760
        %v1713 = vsub.f32 %v1311, %v1712
        %1714 = vmatpush1.msra.mxu0 %v1713
        %1715 = vmatprep.subr.mxu0 0.0
        %v1716 = vand.u32 %v1312, 4294901760
        %v1717 = vsub.f32 %v1312, %v1716
        %1718 = vmatpush1.msra.mxu0 %v1717
        %1719 = vmatprep.subr.mxu0 0.0
        %v1720 = vand.u32 %v1313, 4294901760
        %v1721 = vsub.f32 %v1313, %v1720
        %1722 = vmatpush1.msra.mxu0 %v1721
        %1723 = vmatprep.subr.mxu0 0.0
        %v1724 = vand.u32 %v1314, 4294901760
        %v1725 = vsub.f32 %v1314, %v1724
        %1726 = vmatpush1.msra.mxu0 %v1725
        %1727 = vmatprep.subr.mxu0 0.0
        %v1728 = vand.u32 %v1315, 4294901760
        %v1729 = vsub.f32 %v1315, %v1728
        %1730 = vmatpush1.msra.mxu0 %v1729
        %1731 = vmatprep.subr.mxu0 0.0
        %v1732 = vand.u32 %v1316, 4294901760
        %v1733 = vsub.f32 %v1316, %v1732
        %1734 = vmatpush1.msra.mxu0 %v1733
        %1735 = vmatprep.subr.mxu0 0.0
        %v1736 = vand.u32 %v1317, 4294901760
        %v1737 = vsub.f32 %v1317, %v1736
        %1738 = vmatpush1.msra.mxu0 %v1737
        %1739 = vmatprep.subr.mxu0 0.0
        %v1740 = vand.u32 %v1318, 4294901760
        %v1741 = vsub.f32 %v1318, %v1740
        %1742 = vmatpush1.msra.mxu0 %v1741
        %1743 = vmatprep.subr.mxu0 0.0
        %v1744 = vand.u32 %v1319, 4294901760
        %v1745 = vsub.f32 %v1319, %v1744
        %1746 = vmatpush1.msra.mxu0 %v1745
        %1747 = vmatprep.subr.mxu0 0.0
        %v1748 = vand.u32 %v1320, 4294901760
        %v1749 = vsub.f32 %v1320, %v1748
        %1750 = vmatpush1.msra.mxu0 %v1749
        %1751 = vmatprep.subr.mxu0 0.0
        %v1752 = vand.u32 %v1321, 4294901760
        %v1753 = vsub.f32 %v1321, %v1752
        %1754 = vmatpush1.msra.mxu0 %v1753
        %1755 = vmatprep.subr.mxu0 0.0
        %v1756 = vand.u32 %v1322, 4294901760
        %v1757 = vsub.f32 %v1322, %v1756
        %1758 = vmatpush1.msra.mxu0 %v1757
        %1759 = vmatprep.subr.mxu0 0.0
        %v1760 = vand.u32 %v1323, 4294901760
        %v1761 = vsub.f32 %v1323, %v1760
        %1762 = vmatpush1.msra.mxu0 %v1761
        %1763 = vmatprep.subr.mxu0 0.0
        %v1764 = vand.u32 %v1324, 4294901760
        %v1765 = vsub.f32 %v1324, %v1764
        %1766 = vmatpush1.msra.mxu0 %v1765
        %1767 = vmatprep.subr.mxu0 0.0
        %v1768 = vand.u32 %v1325, 4294901760
        %v1769 = vsub.f32 %v1325, %v1768
        %1770 = vmatpush1.msra.mxu0 %v1769
        %1771 = vmatprep.subr.mxu0 0.0
        %v1772 = vand.u32 %v1326, 4294901760
        %v1773 = vsub.f32 %v1326, %v1772
        %1774 = vmatpush1.msra.mxu0 %v1773
        %1775 = vmatprep.subr.mxu0 0.0
        %v1776 = vand.u32 %v1327, 4294901760
        %v1777 = vsub.f32 %v1327, %v1776
        %1778 = vmatpush1.msra.mxu0 %v1777
        %1779 = vmatprep.subr.mxu0 0.0
        %v1780 = vand.u32 %v1328, 4294901760
        %v1781 = vsub.f32 %v1328, %v1780
        %1782 = vmatpush1.msra.mxu0 %v1781
        %1783 = vmatprep.subr.mxu0 0.0
        %v1784 = vand.u32 %v1329, 4294901760
        %v1785 = vsub.f32 %v1329, %v1784
        %1786 = vmatpush1.msra.mxu0 %v1785
        %1787 = vmatprep.subr.mxu0 0.0
        %v1788 = vand.u32 %v1330, 4294901760
        %v1789 = vsub.f32 %v1330, %v1788
        %1790 = vmatpush1.msra.mxu0 %v1789
        %1791 = vmatprep.subr.mxu0 0.0
        %v1792 = vand.u32 %v1331, 4294901760
        %v1793 = vsub.f32 %v1331, %v1792
        %1794 = vmatpush1.msra.mxu0 %v1793
        %1795 = vmatprep.subr.mxu0 0.0
        %v1796 = vand.u32 %v1332, 4294901760
        %v1797 = vsub.f32 %v1332, %v1796
        %1798 = vmatpush1.msra.mxu0 %v1797
        %1799 = vmatprep.subr.mxu0 0.0
        %v1800 = vand.u32 %v1333, 4294901760
        %v1801 = vsub.f32 %v1333, %v1800
        %1802 = vmatpush1.msra.mxu0 %v1801
        %1803 = vmatprep.subr.mxu0 0.0
        %v1804 = vand.u32 %v1334, 4294901760
        %v1805 = vsub.f32 %v1334, %v1804
        %1806 = vmatpush1.msra.mxu0 %v1805
        %v1807 = vand.u32 %v1301, 4294901760
        %v1808 = vsub.f32 %v1301, %v1807
        %1809 = vmatprep.mubr.f32.mxu0 %v1808
        %v1810 = vand.u32 %v1300, 4294901760
        %v1811 = vsub.f32 %v1300, %v1810
        %1812 = vmatmul.mubr.f32.gmra.mrb[0].mxu0 %v1811
        %v1813 = vpop.f32.mrb[0].mxu0
        %v1814 = vadd.f32 %v1676, %v1813
        %v1815 = vpop.f32.mrb[0].mxu0
        %1816 = vdwg.mxu0
        %1817 = vmatprep.subr.mxu0 0.0
        %v1818 = vand.u32 %v1303, 4294901760
        %1819 = vmatpush1.msra.mxu0 %v1818
        %1820 = vmatprep.subr.mxu0 0.0
        %v1821 = vand.u32 %v1304, 4294901760
        %1822 = vmatpush1.msra.mxu0 %v1821
        %1823 = vmatprep.subr.mxu0 0.0
        %v1824 = vand.u32 %v1305, 4294901760
        %1825 = vmatpush1.msra.mxu0 %v1824
        %1826 = vmatprep.subr.mxu0 0.0
        %v1827 = vand.u32 %v1306, 4294901760
        %1828 = vmatpush1.msra.mxu0 %v1827
        %1829 = vmatprep.subr.mxu0 0.0
        %v1830 = vand.u32 %v1307, 4294901760
        %1831 = vmatpush1.msra.mxu0 %v1830
        %1832 = vmatprep.subr.mxu0 0.0
        %v1833 = vand.u32 %v1308, 4294901760
        %1834 = vmatpush1.msra.mxu0 %v1833
        %1835 = vmatprep.subr.mxu0 0.0
        %v1836 = vand.u32 %v1309, 4294901760
        %1837 = vmatpush1.msra.mxu0 %v1836
        %1838 = vmatprep.subr.mxu0 0.0
        %v1839 = vand.u32 %v1310, 4294901760
        %1840 = vmatpush1.msra.mxu0 %v1839
        %1841 = vmatprep.subr.mxu0 0.0
        %v1842 = vand.u32 %v1311, 4294901760
        %1843 = vmatpush1.msra.mxu0 %v1842
        %1844 = vmatprep.subr.mxu0 0.0
        %v1845 = vand.u32 %v1312, 4294901760
        %1846 = vmatpush1.msra.mxu0 %v1845
        %1847 = vmatprep.subr.mxu0 0.0
        %v1848 = vand.u32 %v1313, 4294901760
        %1849 = vmatpush1.msra.mxu0 %v1848
        %1850 = vmatprep.subr.mxu0 0.0
        %v1851 = vand.u32 %v1314, 4294901760
        %1852 = vmatpush1.msra.mxu0 %v1851
        %1853 = vmatprep.subr.mxu0 0.0
        %v1854 = vand.u32 %v1315, 4294901760
        %1855 = vmatpush1.msra.mxu0 %v1854
        %1856 = vmatprep.subr.mxu0 0.0
        %v1857 = vand.u32 %v1316, 4294901760
        %1858 = vmatpush1.msra.mxu0 %v1857
        %1859 = vmatprep.subr.mxu0 0.0
        %v1860 = vand.u32 %v1317, 4294901760
        %1861 = vmatpush1.msra.mxu0 %v1860
        %1862 = vmatprep.subr.mxu0 0.0
        %v1863 = vand.u32 %v1318, 4294901760
        %1864 = vmatpush1.msra.mxu0 %v1863
        %1865 = vmatprep.subr.mxu0 0.0
        %v1866 = vand.u32 %v1319, 4294901760
        %1867 = vmatpush1.msra.mxu0 %v1866
        %1868 = vmatprep.subr.mxu0 0.0
        %v1869 = vand.u32 %v1320, 4294901760
        %1870 = vmatpush1.msra.mxu0 %v1869
        %1871 = vmatprep.subr.mxu0 0.0
        %v1872 = vand.u32 %v1321, 4294901760
        %1873 = vmatpush1.msra.mxu0 %v1872
        %1874 = vmatprep.subr.mxu0 0.0
        %v1875 = vand.u32 %v1322, 4294901760
        %1876 = vmatpush1.msra.mxu0 %v1875
        %1877 = vmatprep.subr.mxu0 0.0
        %v1878 = vand.u32 %v1323, 4294901760
        %1879 = vmatpush1.msra.mxu0 %v1878
        %1880 = vmatprep.subr.mxu0 0.0
        %v1881 = vand.u32 %v1324, 4294901760
        %1882 = vmatpush1.msra.mxu0 %v1881
        %1883 = vmatprep.subr.mxu0 0.0
        %v1884 = vand.u32 %v1325, 4294901760
        %1885 = vmatpush1.msra.mxu0 %v1884
        %1886 = vmatprep.subr.mxu0 0.0
        %v1887 = vand.u32 %v1326, 4294901760
        %1888 = vmatpush1.msra.mxu0 %v1887
        %1889 = vmatprep.subr.mxu0 0.0
        %v1890 = vand.u32 %v1327, 4294901760
        %1891 = vmatpush1.msra.mxu0 %v1890
        %1892 = vmatprep.subr.mxu0 0.0
        %v1893 = vand.u32 %v1328, 4294901760
        %1894 = vmatpush1.msra.mxu0 %v1893
        %1895 = vmatprep.subr.mxu0 0.0
        %v1896 = vand.u32 %v1329, 4294901760
        %1897 = vmatpush1.msra.mxu0 %v1896
        %1898 = vmatprep.subr.mxu0 0.0
        %v1899 = vand.u32 %v1330, 4294901760
        %1900 = vmatpush1.msra.mxu0 %v1899
        %1901 = vmatprep.subr.mxu0 0.0
        %v1902 = vand.u32 %v1331, 4294901760
        %1903 = vmatpush1.msra.mxu0 %v1902
        %1904 = vmatprep.subr.mxu0 0.0
        %v1905 = vand.u32 %v1332, 4294901760
        %1906 = vmatpush1.msra.mxu0 %v1905
        %1907 = vmatprep.subr.mxu0 0.0
        %v1908 = vand.u32 %v1333, 4294901760
        %1909 = vmatpush1.msra.mxu0 %v1908
        %1910 = vmatprep.subr.mxu0 0.0
        %v1911 = vand.u32 %v1334, 4294901760
        %1912 = vmatpush1.msra.mxu0 %v1911
        %v1913 = vand.u32 %v1301, 4294901760
        %v1914 = vsub.f32 %v1301, %v1913
        %v1915 = vand.u32 %v1914, 4294901760
        %1916 = vmatprep.mubr.f32.mxu0 %v1915
        %v1917 = vand.u32 %v1300, 4294901760
        %v1918 = vsub.f32 %v1300, %v1917
        %v1919 = vand.u32 %v1918, 4294901760
        %1920 = vmatmul.mubr.f32.gmra.mrb[0].mxu0 %v1919
        %v1921 = vpop.f32.mrb[0].mxu0
        %v1922 = vadd.f32 %v1814, %v1921
        %v1923 = vpop.f32.mrb[0].mxu0
        %1924 = vdwg.mxu0
        %1925 = vmatprep.subr.mxu0 0.0
        %v1926 = vand.u32 %v1303, 4294901760
        %v1927 = vsub.f32 %v1303, %v1926
        %v1928 = vand.u32 %v1927, 4294901760
        %1929 = vmatpush1.msra.mxu0 %v1928
        %1930 = vmatprep.subr.mxu0 0.0
        %v1931 = vand.u32 %v1304, 4294901760
        %v1932 = vsub.f32 %v1304, %v1931
        %v1933 = vand.u32 %v1932, 4294901760
        %1934 = vmatpush1.msra.mxu0 %v1933
        %1935 = vmatprep.subr.mxu0 0.0
        %v1936 = vand.u32 %v1305, 4294901760
        %v1937 = vsub.f32 %v1305, %v1936
        %v1938 = vand.u32 %v1937, 4294901760
        %1939 = vmatpush1.msra.mxu0 %v1938
        %1940 = vmatprep.subr.mxu0 0.0
        %v1941 = vand.u32 %v1306, 4294901760
        %v1942 = vsub.f32 %v1306, %v1941
        %v1943 = vand.u32 %v1942, 4294901760
        %1944 = vmatpush1.msra.mxu0 %v1943
        %1945 = vmatprep.subr.mxu0 0.0
        %v1946 = vand.u32 %v1307, 4294901760
        %v1947 = vsub.f32 %v1307, %v1946
        %v1948 = vand.u32 %v1947, 4294901760
        %1949 = vmatpush1.msra.mxu0 %v1948
        %1950 = vmatprep.subr.mxu0 0.0
        %v1951 = vand.u32 %v1308, 4294901760
        %v1952 = vsub.f32 %v1308, %v1951
        %v1953 = vand.u32 %v1952, 4294901760
        %1954 = vmatpush1.msra.mxu0 %v1953
        %1955 = vmatprep.subr.mxu0 0.0
        %v1956 = vand.u32 %v1309, 4294901760
        %v1957 = vsub.f32 %v1309, %v1956
        %v1958 = vand.u32 %v1957, 4294901760
        %1959 = vmatpush1.msra.mxu0 %v1958
        %1960 = vmatprep.subr.mxu0 0.0
        %v1961 = vand.u32 %v1310, 4294901760
        %v1962 = vsub.f32 %v1310, %v1961
        %v1963 = vand.u32 %v1962, 4294901760
        %1964 = vmatpush1.msra.mxu0 %v1963
        %1965 = vmatprep.subr.mxu0 0.0
        %v1966 = vand.u32 %v1311, 4294901760
        %v1967 = vsub.f32 %v1311, %v1966
        %v1968 = vand.u32 %v1967, 4294901760
        %1969 = vmatpush1.msra.mxu0 %v1968
        %1970 = vmatprep.subr.mxu0 0.0
        %v1971 = vand.u32 %v1312, 4294901760
        %v1972 = vsub.f32 %v1312, %v1971
        %v1973 = vand.u32 %v1972, 4294901760
        %1974 = vmatpush1.msra.mxu0 %v1973
        %1975 = vmatprep.subr.mxu0 0.0
        %v1976 = vand.u32 %v1313, 4294901760
        %v1977 = vsub.f32 %v1313, %v1976
        %v1978 = vand.u32 %v1977, 4294901760
        %1979 = vmatpush1.msra.mxu0 %v1978
        %1980 = vmatprep.subr.mxu0 0.0
        %v1981 = vand.u32 %v1314, 4294901760
        %v1982 = vsub.f32 %v1314, %v1981
        %v1983 = vand.u32 %v1982, 4294901760
        %1984 = vmatpush1.msra.mxu0 %v1983
        %1985 = vmatprep.subr.mxu0 0.0
        %v1986 = vand.u32 %v1315, 4294901760
        %v1987 = vsub.f32 %v1315, %v1986
        %v1988 = vand.u32 %v1987, 4294901760
        %1989 = vmatpush1.msra.mxu0 %v1988
        %1990 = vmatprep.subr.mxu0 0.0
        %v1991 = vand.u32 %v1316, 4294901760
        %v1992 = vsub.f32 %v1316, %v1991
        %v1993 = vand.u32 %v1992, 4294901760
        %1994 = vmatpush1.msra.mxu0 %v1993
        %1995 = vmatprep.subr.mxu0 0.0
        %v1996 = vand.u32 %v1317, 4294901760
        %v1997 = vsub.f32 %v1317, %v1996
        %v1998 = vand.u32 %v1997, 4294901760
        %1999 = vmatpush1.msra.mxu0 %v1998
        %2000 = vmatprep.subr.mxu0 0.0
        %v2001 = vand.u32 %v1318, 4294901760
        %v2002 = vsub.f32 %v1318, %v2001
        %v2003 = vand.u32 %v2002, 4294901760
        %2004 = vmatpush1.msra.mxu0 %v2003
        %2005 = vmatprep.subr.mxu0 0.0
        %v2006 = vand.u32 %v1319, 4294901760
        %v2007 = vsub.f32 %v1319, %v2006
        %v2008 = vand.u32 %v2007, 4294901760
        %2009 = vmatpush1.msra.mxu0 %v2008
        %2010 = vmatprep.subr.mxu0 0.0
        %v2011 = vand.u32 %v1320, 4294901760
        %v2012 = vsub.f32 %v1320, %v2011
        %v2013 = vand.u32 %v2012, 4294901760
        %2014 = vmatpush1.msra.mxu0 %v2013
        %2015 = vmatprep.subr.mxu0 0.0
        %v2016 = vand.u32 %v1321, 4294901760
        %v2017 = vsub.f32 %v1321, %v2016
        %v2018 = vand.u32 %v2017, 4294901760
        %2019 = vmatpush1.msra.mxu0 %v2018
        %2020 = vmatprep.subr.mxu0 0.0
        %v2021 = vand.u32 %v1322, 4294901760
        %v2022 = vsub.f32 %v1322, %v2021
        %v2023 = vand.u32 %v2022, 4294901760
        %2024 = vmatpush1.msra.mxu0 %v2023
        %2025 = vmatprep.subr.mxu0 0.0
        %v2026 = vand.u32 %v1323, 4294901760
        %v2027 = vsub.f32 %v1323, %v2026
        %v2028 = vand.u32 %v2027, 4294901760
        %2029 = vmatpush1.msra.mxu0 %v2028
        %2030 = vmatprep.subr.mxu0 0.0
        %v2031 = vand.u32 %v1324, 4294901760
        %v2032 = vsub.f32 %v1324, %v2031
        %v2033 = vand.u32 %v2032, 4294901760
        %2034 = vmatpush1.msra.mxu0 %v2033
        %2035 = vmatprep.subr.mxu0 0.0
        %v2036 = vand.u32 %v1325, 4294901760
        %v2037 = vsub.f32 %v1325, %v2036
        %v2038 = vand.u32 %v2037, 4294901760
        %2039 = vmatpush1.msra.mxu0 %v2038
        %2040 = vmatprep.subr.mxu0 0.0
        %v2041 = vand.u32 %v1326, 4294901760
        %v2042 = vsub.f32 %v1326, %v2041
        %v2043 = vand.u32 %v2042, 4294901760
        %2044 = vmatpush1.msra.mxu0 %v2043
        %2045 = vmatprep.subr.mxu0 0.0
        %v2046 = vand.u32 %v1327, 4294901760
        %v2047 = vsub.f32 %v1327, %v2046
        %v2048 = vand.u32 %v2047, 4294901760
        %2049 = vmatpush1.msra.mxu0 %v2048
        %2050 = vmatprep.subr.mxu0 0.0
        %v2051 = vand.u32 %v1328, 4294901760
        %v2052 = vsub.f32 %v1328, %v2051
        %v2053 = vand.u32 %v2052, 4294901760
        %2054 = vmatpush1.msra.mxu0 %v2053
        %2055 = vmatprep.subr.mxu0 0.0
        %v2056 = vand.u32 %v1329, 4294901760
        %v2057 = vsub.f32 %v1329, %v2056
        %v2058 = vand.u32 %v2057, 4294901760
        %2059 = vmatpush1.msra.mxu0 %v2058
        %2060 = vmatprep.subr.mxu0 0.0
        %v2061 = vand.u32 %v1330, 4294901760
        %v2062 = vsub.f32 %v1330, %v2061
        %v2063 = vand.u32 %v2062, 4294901760
        %2064 = vmatpush1.msra.mxu0 %v2063
        %2065 = vmatprep.subr.mxu0 0.0
        %v2066 = vand.u32 %v1331, 4294901760
        %v2067 = vsub.f32 %v1331, %v2066
        %v2068 = vand.u32 %v2067, 4294901760
        %2069 = vmatpush1.msra.mxu0 %v2068
        %2070 = vmatprep.subr.mxu0 0.0
        %v2071 = vand.u32 %v1332, 4294901760
        %v2072 = vsub.f32 %v1332, %v2071
        %v2073 = vand.u32 %v2072, 4294901760
        %2074 = vmatpush1.msra.mxu0 %v2073
        %2075 = vmatprep.subr.mxu0 0.0
        %v2076 = vand.u32 %v1333, 4294901760
        %v2077 = vsub.f32 %v1333, %v2076
        %v2078 = vand.u32 %v2077, 4294901760
        %2079 = vmatpush1.msra.mxu0 %v2078
        %2080 = vmatprep.subr.mxu0 0.0
        %v2081 = vand.u32 %v1334, 4294901760
        %v2082 = vsub.f32 %v1334, %v2081
        %v2083 = vand.u32 %v2082, 4294901760
        %2084 = vmatpush1.msra.mxu0 %v2083
        %v2085 = vand.u32 %v1301, 4294901760
        %2086 = vmatprep.mubr.f32.mxu0 %v2085
        %v2087 = vand.u32 %v1300, 4294901760
        %2088 = vmatmul.mubr.f32.gmra.mrb[0].mxu0 %v2087
        %v2089 = vpop.f32.mrb[0].mxu0
        %v2090 = vadd.f32 %v1922, %v2089
        %v2091 = vpop.f32.mrb[0].mxu0
        %2092 = vdwg.mxu0
        %2093 = vmatprep.subr.mxu0 0.0
        %v2094 = vand.u32 %v1303, 4294901760
        %2095 = vmatpush1.msra.mxu0 %v2094
        %2096 = vmatprep.subr.mxu0 0.0
        %v2097 = vand.u32 %v1304, 4294901760
        %2098 = vmatpush1.msra.mxu0 %v2097
        %2099 = vmatprep.subr.mxu0 0.0
        %v2100 = vand.u32 %v1305, 4294901760
        %2101 = vmatpush1.msra.mxu0 %v2100
        %2102 = vmatprep.subr.mxu0 0.0
        %v2103 = vand.u32 %v1306, 4294901760
        %2104 = vmatpush1.msra.mxu0 %v2103
        %2105 = vmatprep.subr.mxu0 0.0
        %v2106 = vand.u32 %v1307, 4294901760
        %2107 = vmatpush1.msra.mxu0 %v2106
        %2108 = vmatprep.subr.mxu0 0.0
        %v2109 = vand.u32 %v1308, 4294901760
        %2110 = vmatpush1.msra.mxu0 %v2109
        %2111 = vmatprep.subr.mxu0 0.0
        %v2112 = vand.u32 %v1309, 4294901760
        %2113 = vmatpush1.msra.mxu0 %v2112
        %2114 = vmatprep.subr.mxu0 0.0
        %v2115 = vand.u32 %v1310, 4294901760
        %2116 = vmatpush1.msra.mxu0 %v2115
        %2117 = vmatprep.subr.mxu0 0.0
        %v2118 = vand.u32 %v1311, 4294901760
        %2119 = vmatpush1.msra.mxu0 %v2118
        %2120 = vmatprep.subr.mxu0 0.0
        %v2121 = vand.u32 %v1312, 4294901760
        %2122 = vmatpush1.msra.mxu0 %v2121
        %2123 = vmatprep.subr.mxu0 0.0
        %v2124 = vand.u32 %v1313, 4294901760
        %2125 = vmatpush1.msra.mxu0 %v2124
        %2126 = vmatprep.subr.mxu0 0.0
        %v2127 = vand.u32 %v1314, 4294901760
        %2128 = vmatpush1.msra.mxu0 %v2127
        %2129 = vmatprep.subr.mxu0 0.0
        %v2130 = vand.u32 %v1315, 4294901760
        %2131 = vmatpush1.msra.mxu0 %v2130
        %2132 = vmatprep.subr.mxu0 0.0
        %v2133 = vand.u32 %v1316, 4294901760
        %2134 = vmatpush1.msra.mxu0 %v2133
        %2135 = vmatprep.subr.mxu0 0.0
        %v2136 = vand.u32 %v1317, 4294901760
        %2137 = vmatpush1.msra.mxu0 %v2136
        %2138 = vmatprep.subr.mxu0 0.0
        %v2139 = vand.u32 %v1318, 4294901760
        %2140 = vmatpush1.msra.mxu0 %v2139
        %2141 = vmatprep.subr.mxu0 0.0
        %v2142 = vand.u32 %v1319, 4294901760
        %2143 = vmatpush1.msra.mxu0 %v2142
        %2144 = vmatprep.subr.mxu0 0.0
        %v2145 = vand.u32 %v1320, 4294901760
        %2146 = vmatpush1.msra.mxu0 %v2145
        %2147 = vmatprep.subr.mxu0 0.0
        %v2148 = vand.u32 %v1321, 4294901760
        %2149 = vmatpush1.msra.mxu0 %v2148
        %2150 = vmatprep.subr.mxu0 0.0
        %v2151 = vand.u32 %v1322, 4294901760
        %2152 = vmatpush1.msra.mxu0 %v2151
        %2153 = vmatprep.subr.mxu0 0.0
        %v2154 = vand.u32 %v1323, 4294901760
        %2155 = vmatpush1.msra.mxu0 %v2154
        %2156 = vmatprep.subr.mxu0 0.0
        %v2157 = vand.u32 %v1324, 4294901760
        %2158 = vmatpush1.msra.mxu0 %v2157
        %2159 = vmatprep.subr.mxu0 0.0
        %v2160 = vand.u32 %v1325, 4294901760
        %2161 = vmatpush1.msra.mxu0 %v2160
        %2162 = vmatprep.subr.mxu0 0.0
        %v2163 = vand.u32 %v1326, 4294901760
        %2164 = vmatpush1.msra.mxu0 %v2163
        %2165 = vmatprep.subr.mxu0 0.0
        %v2166 = vand.u32 %v1327, 4294901760
        %2167 = vmatpush1.msra.mxu0 %v2166
        %2168 = vmatprep.subr.mxu0 0.0
        %v2169 = vand.u32 %v1328, 4294901760
        %2170 = vmatpush1.msra.mxu0 %v2169
        %2171 = vmatprep.subr.mxu0 0.0
        %v2172 = vand.u32 %v1329, 4294901760
        %2173 = vmatpush1.msra.mxu0 %v2172
        %2174 = vmatprep.subr.mxu0 0.0
        %v2175 = vand.u32 %v1330, 4294901760
        %2176 = vmatpush1.msra.mxu0 %v2175
        %2177 = vmatprep.subr.mxu0 0.0
        %v2178 = vand.u32 %v1331, 4294901760
        %2179 = vmatpush1.msra.mxu0 %v2178
        %2180 = vmatprep.subr.mxu0 0.0
        %v2181 = vand.u32 %v1332, 4294901760
        %2182 = vmatpush1.msra.mxu0 %v2181
        %2183 = vmatprep.subr.mxu0 0.0
        %v2184 = vand.u32 %v1333, 4294901760
        %2185 = vmatpush1.msra.mxu0 %v2184
        %2186 = vmatprep.subr.mxu0 0.0
        %v2187 = vand.u32 %v1334, 4294901760
        %2188 = vmatpush1.msra.mxu0 %v2187
        %v2189 = vand.u32 %v1301, 4294901760
        %2190 = vmatprep.mubr.f32.mxu0 %v2189
        %v2191 = vand.u32 %v1300, 4294901760
        %2192 = vmatmul.mubr.f32.gmra.mrb[0].mxu0 %v2191
        %v2193 = vpop.f32.mrb[0].mxu0
        %v2194 = vadd.f32 %v2090, %v2193
        %v2195 = vpop.f32.mrb[0].mxu0
        %2196 = vdwg.mxu0
        %v2197 = vadd.f32 %v1302, %v2194
        %2198 = vst [vmem:[%s379] sm:$0xff] %v2197
        // Predicated region
        $region69: #{tpu_custom_call.1} parent=47 // pred_check
          %p2199 = pneg %p387
        $region70: #{tpu_custom_call.1} parent=47 // pred_check_branch
          %2201 = sbr.rel (%p2199) target = $region72
        $region71: #{tpu_custom_call.1} parent=47 // pred_region
          %v2202 = vld [vmem:[#allocation5] sm:$0xff]
          %v2203 = vld [vmem:[#allocation5 + $0x8] sm:$0xff]
          %v2204 = vld [vmem:[#allocation5 + $0x10] sm:$0xff]
          %v2205 = vld [vmem:[#allocation5 + $0x18] sm:$0xff]
          %v2206 = vld [vmem:[#allocation5 + $0x20] sm:$0xff]
          %v2207 = vld [vmem:[#allocation5 + $0x28] sm:$0xff]
          %v2208 = vld [vmem:[#allocation5 + $0x30] sm:$0xff]
          %v2209 = vld [vmem:[#allocation5 + $0x38] sm:$0xff]
          %v2210 = vld [vmem:[#allocation5 + $0x40] sm:$0xff]
          %v2211 = vld [vmem:[#allocation5 + $0x48] sm:$0xff]
          %v2212 = vld [vmem:[#allocation5 + $0x50] sm:$0xff]
          %v2213 = vld [vmem:[#allocation5 + $0x58] sm:$0xff]
          %v2214 = vld [vmem:[#allocation5 + $0x60] sm:$0xff]
          %v2215 = vld [vmem:[#allocation5 + $0x68] sm:$0xff]
          %v2216 = vld [vmem:[#allocation5 + $0x70] sm:$0xff]
          %v2217 = vld [vmem:[#allocation5 + $0x78] sm:$0xff]
          %v2218 = vld [vmem:[%s2] sm:$0x1]
          %v2220 = vlaneseq
          %v2221 = vshrl.u32 %v2220, 7
          %v2222 = vsub.s32 0, %v2221
          %v2223 = vrot.slane %v2218, %v2222
          %2225 = vmatprep.subr.mxu0 0.0
          %v2226 = vand.u32 %v2202, 4294901760
          %2227 = vmatpush1.msra.mxu0 %v2226
          %2228 = vmatprep.subr.mxu0 0.0
          %v2229 = vand.u32 %v2203, 4294901760
          %2230 = vmatpush1.msra.mxu0 %v2229
          %2231 = vmatprep.subr.mxu0 0.0
          %v2232 = vand.u32 %v2204, 4294901760
          %2233 = vmatpush1.msra.mxu0 %v2232
          %2234 = vmatprep.subr.mxu0 0.0
          %v2235 = vand.u32 %v2205, 4294901760
          %2236 = vmatpush1.msra.mxu0 %v2235
          %2237 = vmatprep.subr.mxu0 0.0
          %v2238 = vand.u32 %v2206, 4294901760
          %2239 = vmatpush1.msra.mxu0 %v2238
          %2240 = vmatprep.subr.mxu0 0.0
          %v2241 = vand.u32 %v2207, 4294901760
          %2242 = vmatpush1.msra.mxu0 %v2241
          %2243 = vmatprep.subr.mxu0 0.0
          %v2244 = vand.u32 %v2208, 4294901760
          %2245 = vmatpush1.msra.mxu0 %v2244
          %2246 = vmatprep.subr.mxu0 0.0
          %v2247 = vand.u32 %v2209, 4294901760
          %2248 = vmatpush1.msra.mxu0 %v2247
          %2249 = vmatprep.subr.mxu0 0.0
          %v2250 = vand.u32 %v2210, 4294901760
          %2251 = vmatpush1.msra.mxu0 %v2250
          %2252 = vmatprep.subr.mxu0 0.0
          %v2253 = vand.u32 %v2211, 4294901760
          %2254 = vmatpush1.msra.mxu0 %v2253
          %2255 = vmatprep.subr.mxu0 0.0
          %v2256 = vand.u32 %v2212, 4294901760
          %2257 = vmatpush1.msra.mxu0 %v2256
          %2258 = vmatprep.subr.mxu0 0.0
          %v2259 = vand.u32 %v2213, 4294901760
          %2260 = vmatpush1.msra.mxu0 %v2259
          %2261 = vmatprep.subr.mxu0 0.0
          %v2262 = vand.u32 %v2214, 4294901760
          %2263 = vmatpush1.msra.mxu0 %v2262
          %2264 = vmatprep.subr.mxu0 0.0
          %v2265 = vand.u32 %v2215, 4294901760
          %2266 = vmatpush1.msra.mxu0 %v2265
          %2267 = vmatprep.subr.mxu0 0.0
          %v2268 = vand.u32 %v2216, 4294901760
          %2269 = vmatpush1.msra.mxu0 %v2268
          %2270 = vmatprep.subr.mxu0 0.0
          %v2271 = vand.u32 %v2217, 4294901760
          %2272 = vmatpush1.msra.mxu0 %v2271
          %2273 = vmatprep.subr.mxu0 0.0
          %2274 = vmatpush1.msra.mxu0 0.0
          %2275 = vmatprep.subr.mxu0 0.0
          %2276 = vmatpush1.msra.mxu0 0.0
          %2277 = vmatprep.subr.mxu0 0.0
          %2278 = vmatpush1.msra.mxu0 0.0
          %2279 = vmatprep.subr.mxu0 0.0
          %2280 = vmatpush1.msra.mxu0 0.0
          %2281 = vmatprep.subr.mxu0 0.0
          %2282 = vmatpush1.msra.mxu0 0.0
          %2283 = vmatprep.subr.mxu0 0.0
          %2284 = vmatpush1.msra.mxu0 0.0
          %2285 = vmatprep.subr.mxu0 0.0
          %2286 = vmatpush1.msra.mxu0 0.0
          %2287 = vmatprep.subr.mxu0 0.0
          %2288 = vmatpush1.msra.mxu0 0.0
          %2289 = vmatprep.subr.mxu0 0.0
          %2290 = vmatpush1.msra.mxu0 0.0
          %2291 = vmatprep.subr.mxu0 0.0
          %2292 = vmatpush1.msra.mxu0 0.0
          %2293 = vmatprep.subr.mxu0 0.0
          %2294 = vmatpush1.msra.mxu0 0.0
          %2295 = vmatprep.subr.mxu0 0.0
          %2296 = vmatpush1.msra.mxu0 0.0
          %2297 = vmatprep.subr.mxu0 0.0
          %2298 = vmatpush1.msra.mxu0 0.0
          %2299 = vmatprep.subr.mxu0 0.0
          %2300 = vmatpush1.msra.mxu0 0.0
          %2301 = vmatprep.subr.mxu0 0.0
          %2302 = vmatpush1.msra.mxu0 0.0
          %2303 = vmatprep.subr.mxu0 0.0
          %2304 = vmatpush1.msra.mxu0 0.0
          %2305 = vmatprep.mubr.f32.mxu0 0.0
          %v2306 = vand.u32 %v392, 4294901760
          %v2307 = vsub.f32 %v392, %v2306
          %v2308 = vand.u32 %v2307, 4294901760
          %v2309 = vsub.f32 %v2307, %v2308
          %v2310 = vand.u32 %v2309, 4294901760
          %2311 = vmatmul.mubr.f32.gmra.mrb[0].mxu0 %v2310
          %v2312 = vpop.f32.mrb[0].mxu0
          %v2313 = vadd.f32 %v2223, %v2312
          %v2314 = vpop.f32.mrb[0].mxu0
          %2315 = vdwg.mxu0
          %2316 = vmatprep.subr.mxu0 0.0
          %v2317 = vand.u32 %v2202, 4294901760
          %v2318 = vsub.f32 %v2202, %v2317
          %v2319 = vand.u32 %v2318, 4294901760
          %v2320 = vsub.f32 %v2318, %v2319
          %v2321 = vand.u32 %v2320, 4294901760
          %2322 = vmatpush1.msra.mxu0 %v2321
          %2323 = vmatprep.subr.mxu0 0.0
          %v2324 = vand.u32 %v2203, 4294901760
          %v2325 = vsub.f32 %v2203, %v2324
          %v2326 = vand.u32 %v2325, 4294901760
          %v2327 = vsub.f32 %v2325, %v2326
          %v2328 = vand.u32 %v2327, 4294901760
          %2329 = vmatpush1.msra.mxu0 %v2328
          %2330 = vmatprep.subr.mxu0 0.0
          %v2331 = vand.u32 %v2204, 4294901760
          %v2332 = vsub.f32 %v2204, %v2331
          %v2333 = vand.u32 %v2332, 4294901760
          %v2334 = vsub.f32 %v2332, %v2333
          %v2335 = vand.u32 %v2334, 4294901760
          %2336 = vmatpush1.msra.mxu0 %v2335
          %2337 = vmatprep.subr.mxu0 0.0
          %v2338 = vand.u32 %v2205, 4294901760
          %v2339 = vsub.f32 %v2205, %v2338
          %v2340 = vand.u32 %v2339, 4294901760
          %v2341 = vsub.f32 %v2339, %v2340
          %v2342 = vand.u32 %v2341, 4294901760
          %2343 = vmatpush1.msra.mxu0 %v2342
          %2344 = vmatprep.subr.mxu0 0.0
          %v2345 = vand.u32 %v2206, 4294901760
          %v2346 = vsub.f32 %v2206, %v2345
          %v2347 = vand.u32 %v2346, 4294901760
          %v2348 = vsub.f32 %v2346, %v2347
          %v2349 = vand.u32 %v2348, 4294901760
          %2350 = vmatpush1.msra.mxu0 %v2349
          %2351 = vmatprep.subr.mxu0 0.0
          %v2352 = vand.u32 %v2207, 4294901760
          %v2353 = vsub.f32 %v2207, %v2352
          %v2354 = vand.u32 %v2353, 4294901760
          %v2355 = vsub.f32 %v2353, %v2354
          %v2356 = vand.u32 %v2355, 4294901760
          %2357 = vmatpush1.msra.mxu0 %v2356
          %2358 = vmatprep.subr.mxu0 0.0
          %v2359 = vand.u32 %v2208, 4294901760
          %v2360 = vsub.f32 %v2208, %v2359
          %v2361 = vand.u32 %v2360, 4294901760
          %v2362 = vsub.f32 %v2360, %v2361
          %v2363 = vand.u32 %v2362, 4294901760
          %2364 = vmatpush1.msra.mxu0 %v2363
          %2365 = vmatprep.subr.mxu0 0.0
          %v2366 = vand.u32 %v2209, 4294901760
          %v2367 = vsub.f32 %v2209, %v2366
          %v2368 = vand.u32 %v2367, 4294901760
          %v2369 = vsub.f32 %v2367, %v2368
          %v2370 = vand.u32 %v2369, 4294901760
          %2371 = vmatpush1.msra.mxu0 %v2370
          %2372 = vmatprep.subr.mxu0 0.0
          %v2373 = vand.u32 %v2210, 4294901760
          %v2374 = vsub.f32 %v2210, %v2373
          %v2375 = vand.u32 %v2374, 4294901760
          %v2376 = vsub.f32 %v2374, %v2375
          %v2377 = vand.u32 %v2376, 4294901760
          %2378 = vmatpush1.msra.mxu0 %v2377
          %2379 = vmatprep.subr.mxu0 0.0
          %v2380 = vand.u32 %v2211, 4294901760
          %v2381 = vsub.f32 %v2211, %v2380
          %v2382 = vand.u32 %v2381, 4294901760
          %v2383 = vsub.f32 %v2381, %v2382
          %v2384 = vand.u32 %v2383, 4294901760
          %2385 = vmatpush1.msra.mxu0 %v2384
          %2386 = vmatprep.subr.mxu0 0.0
          %v2387 = vand.u32 %v2212, 4294901760
          %v2388 = vsub.f32 %v2212, %v2387
          %v2389 = vand.u32 %v2388, 4294901760
          %v2390 = vsub.f32 %v2388, %v2389
          %v2391 = vand.u32 %v2390, 4294901760
          %2392 = vmatpush1.msra.mxu0 %v2391
          %2393 = vmatprep.subr.mxu0 0.0
          %v2394 = vand.u32 %v2213, 4294901760
          %v2395 = vsub.f32 %v2213, %v2394
          %v2396 = vand.u32 %v2395, 4294901760
          %v2397 = vsub.f32 %v2395, %v2396
          %v2398 = vand.u32 %v2397, 4294901760
          %2399 = vmatpush1.msra.mxu0 %v2398
          %2400 = vmatprep.subr.mxu0 0.0
          %v2401 = vand.u32 %v2214, 4294901760
          %v2402 = vsub.f32 %v2214, %v2401
          %v2403 = vand.u32 %v2402, 4294901760
          %v2404 = vsub.f32 %v2402, %v2403
          %v2405 = vand.u32 %v2404, 4294901760
          %2406 = vmatpush1.msra.mxu0 %v2405
          %2407 = vmatprep.subr.mxu0 0.0
          %v2408 = vand.u32 %v2215, 4294901760
          %v2409 = vsub.f32 %v2215, %v2408
          %v2410 = vand.u32 %v2409, 4294901760
          %v2411 = vsub.f32 %v2409, %v2410
          %v2412 = vand.u32 %v2411, 4294901760
          %2413 = vmatpush1.msra.mxu0 %v2412
          %2414 = vmatprep.subr.mxu0 0.0
          %v2415 = vand.u32 %v2216, 4294901760
          %v2416 = vsub.f32 %v2216, %v2415
          %v2417 = vand.u32 %v2416, 4294901760
          %v2418 = vsub.f32 %v2416, %v2417
          %v2419 = vand.u32 %v2418, 4294901760
          %2420 = vmatpush1.msra.mxu0 %v2419
          %2421 = vmatprep.subr.mxu0 0.0
          %v2422 = vand.u32 %v2217, 4294901760
          %v2423 = vsub.f32 %v2217, %v2422
          %v2424 = vand.u32 %v2423, 4294901760
          %v2425 = vsub.f32 %v2423, %v2424
          %v2426 = vand.u32 %v2425, 4294901760
          %2427 = vmatpush1.msra.mxu0 %v2426
          %2428 = vmatprep.subr.mxu0 0.0
          %2429 = vmatpush1.msra.mxu0 0.0
          %2430 = vmatprep.subr.mxu0 0.0
          %2431 = vmatpush1.msra.mxu0 0.0
          %2432 = vmatprep.subr.mxu0 0.0
          %2433 = vmatpush1.msra.mxu0 0.0
          %2434 = vmatprep.subr.mxu0 0.0
          %2435 = vmatpush1.msra.mxu0 0.0
          %2436 = vmatprep.subr.mxu0 0.0
          %2437 = vmatpush1.msra.mxu0 0.0
          %2438 = vmatprep.subr.mxu0 0.0
          %2439 = vmatpush1.msra.mxu0 0.0
          %2440 = vmatprep.subr.mxu0 0.0
          %2441 = vmatpush1.msra.mxu0 0.0
          %2442 = vmatprep.subr.mxu0 0.0
          %2443 = vmatpush1.msra.mxu0 0.0
          %2444 = vmatprep.subr.mxu0 0.0
          %2445 = vmatpush1.msra.mxu0 0.0
          %2446 = vmatprep.subr.mxu0 0.0
          %2447 = vmatpush1.msra.mxu0 0.0
          %2448 = vmatprep.subr.mxu0 0.0
          %2449 = vmatpush1.msra.mxu0 0.0
          %2450 = vmatprep.subr.mxu0 0.0
          %2451 = vmatpush1.msra.mxu0 0.0
          %2452 = vmatprep.subr.mxu0 0.0
          %2453 = vmatpush1.msra.mxu0 0.0
          %2454 = vmatprep.subr.mxu0 0.0
          %2455 = vmatpush1.msra.mxu0 0.0
          %2456 = vmatprep.subr.mxu0 0.0
          %2457 = vmatpush1.msra.mxu0 0.0
          %2458 = vmatprep.subr.mxu0 0.0
          %2459 = vmatpush1.msra.mxu0 0.0
          %2460 = vmatprep.mubr.f32.mxu0 0.0
          %v2461 = vand.u32 %v392, 4294901760
          %2462 = vmatmul.mubr.f32.gmra.mrb[0].mxu0 %v2461
          %v2463 = vpop.f32.mrb[0].mxu0
          %v2464 = vadd.f32 %v2313, %v2463
          %v2465 = vpop.f32.mrb[0].mxu0
          %2466 = vdwg.mxu0
          %2467 = vmatprep.subr.mxu0 0.0
          %v2468 = vand.u32 %v2202, 4294901760
          %v2469 = vsub.f32 %v2202, %v2468
          %2470 = vmatpush1.msra.mxu0 %v2469
          %2471 = vmatprep.subr.mxu0 0.0
          %v2472 = vand.u32 %v2203, 4294901760
          %v2473 = vsub.f32 %v2203, %v2472
          %2474 = vmatpush1.msra.mxu0 %v2473
          %2475 = vmatprep.subr.mxu0 0.0
          %v2476 = vand.u32 %v2204, 4294901760
          %v2477 = vsub.f32 %v2204, %v2476
          %2478 = vmatpush1.msra.mxu0 %v2477
          %2479 = vmatprep.subr.mxu0 0.0
          %v2480 = vand.u32 %v2205, 4294901760
          %v2481 = vsub.f32 %v2205, %v2480
          %2482 = vmatpush1.msra.mxu0 %v2481
          %2483 = vmatprep.subr.mxu0 0.0
          %v2484 = vand.u32 %v2206, 4294901760
          %v2485 = vsub.f32 %v2206, %v2484
          %2486 = vmatpush1.msra.mxu0 %v2485
          %2487 = vmatprep.subr.mxu0 0.0
          %v2488 = vand.u32 %v2207, 4294901760
          %v2489 = vsub.f32 %v2207, %v2488
          %2490 = vmatpush1.msra.mxu0 %v2489
          %2491 = vmatprep.subr.mxu0 0.0
          %v2492 = vand.u32 %v2208, 4294901760
          %v2493 = vsub.f32 %v2208, %v2492
          %2494 = vmatpush1.msra.mxu0 %v2493
          %2495 = vmatprep.subr.mxu0 0.0
          %v2496 = vand.u32 %v2209, 4294901760
          %v2497 = vsub.f32 %v2209, %v2496
          %2498 = vmatpush1.msra.mxu0 %v2497
          %2499 = vmatprep.subr.mxu0 0.0
          %v2500 = vand.u32 %v2210, 4294901760
          %v2501 = vsub.f32 %v2210, %v2500
          %2502 = vmatpush1.msra.mxu0 %v2501
          %2503 = vmatprep.subr.mxu0 0.0
          %v2504 = vand.u32 %v2211, 4294901760
          %v2505 = vsub.f32 %v2211, %v2504
          %2506 = vmatpush1.msra.mxu0 %v2505
          %2507 = vmatprep.subr.mxu0 0.0
          %v2508 = vand.u32 %v2212, 4294901760
          %v2509 = vsub.f32 %v2212, %v2508
          %2510 = vmatpush1.msra.mxu0 %v2509
          %2511 = vmatprep.subr.mxu0 0.0
          %v2512 = vand.u32 %v2213, 4294901760
          %v2513 = vsub.f32 %v2213, %v2512
          %2514 = vmatpush1.msra.mxu0 %v2513
          %2515 = vmatprep.subr.mxu0 0.0
          %v2516 = vand.u32 %v2214, 4294901760
          %v2517 = vsub.f32 %v2214, %v2516
          %2518 = vmatpush1.msra.mxu0 %v2517
          %2519 = vmatprep.subr.mxu0 0.0
          %v2520 = vand.u32 %v2215, 4294901760
          %v2521 = vsub.f32 %v2215, %v2520
          %2522 = vmatpush1.msra.mxu0 %v2521
          %2523 = vmatprep.subr.mxu0 0.0
          %v2524 = vand.u32 %v2216, 4294901760
          %v2525 = vsub.f32 %v2216, %v2524
          %2526 = vmatpush1.msra.mxu0 %v2525
          %2527 = vmatprep.subr.mxu0 0.0
          %v2528 = vand.u32 %v2217, 4294901760
          %v2529 = vsub.f32 %v2217, %v2528
          %2530 = vmatpush1.msra.mxu0 %v2529
          %2531 = vmatprep.subr.mxu0 0.0
          %2532 = vmatpush1.msra.mxu0 0.0
          %2533 = vmatprep.subr.mxu0 0.0
          %2534 = vmatpush1.msra.mxu0 0.0
          %2535 = vmatprep.subr.mxu0 0.0
          %2536 = vmatpush1.msra.mxu0 0.0
          %2537 = vmatprep.subr.mxu0 0.0
          %2538 = vmatpush1.msra.mxu0 0.0
          %2539 = vmatprep.subr.mxu0 0.0
          %2540 = vmatpush1.msra.mxu0 0.0
          %2541 = vmatprep.subr.mxu0 0.0
          %2542 = vmatpush1.msra.mxu0 0.0
          %2543 = vmatprep.subr.mxu0 0.0
          %2544 = vmatpush1.msra.mxu0 0.0
          %2545 = vmatprep.subr.mxu0 0.0
          %2546 = vmatpush1.msra.mxu0 0.0
          %2547 = vmatprep.subr.mxu0 0.0
          %2548 = vmatpush1.msra.mxu0 0.0
          %2549 = vmatprep.subr.mxu0 0.0
          %2550 = vmatpush1.msra.mxu0 0.0
          %2551 = vmatprep.subr.mxu0 0.0
          %2552 = vmatpush1.msra.mxu0 0.0
          %2553 = vmatprep.subr.mxu0 0.0
          %2554 = vmatpush1.msra.mxu0 0.0
          %2555 = vmatprep.subr.mxu0 0.0
          %2556 = vmatpush1.msra.mxu0 0.0
          %2557 = vmatprep.subr.mxu0 0.0
          %2558 = vmatpush1.msra.mxu0 0.0
          %2559 = vmatprep.subr.mxu0 0.0
          %2560 = vmatpush1.msra.mxu0 0.0
          %2561 = vmatprep.subr.mxu0 0.0
          %2562 = vmatpush1.msra.mxu0 0.0
          %2563 = vmatprep.mubr.f32.mxu0 0.0
          %v2564 = vand.u32 %v392, 4294901760
          %v2565 = vsub.f32 %v392, %v2564
          %2566 = vmatmul.mubr.f32.gmra.mrb[0].mxu0 %v2565
          %v2567 = vpop.f32.mrb[0].mxu0
          %v2568 = vadd.f32 %v2464, %v2567
          %v2569 = vpop.f32.mrb[0].mxu0
          %2570 = vdwg.mxu0
          %2571 = vmatprep.subr.mxu0 0.0
          %v2572 = vand.u32 %v2202, 4294901760
          %2573 = vmatpush1.msra.mxu0 %v2572
          %2574 = vmatprep.subr.mxu0 0.0
          %v2575 = vand.u32 %v2203, 4294901760
          %2576 = vmatpush1.msra.mxu0 %v2575
          %2577 = vmatprep.subr.mxu0 0.0
          %v2578 = vand.u32 %v2204, 4294901760
          %2579 = vmatpush1.msra.mxu0 %v2578
          %2580 = vmatprep.subr.mxu0 0.0
          %v2581 = vand.u32 %v2205, 4294901760
          %2582 = vmatpush1.msra.mxu0 %v2581
          %2583 = vmatprep.subr.mxu0 0.0
          %v2584 = vand.u32 %v2206, 4294901760
          %2585 = vmatpush1.msra.mxu0 %v2584
          %2586 = vmatprep.subr.mxu0 0.0
          %v2587 = vand.u32 %v2207, 4294901760
          %2588 = vmatpush1.msra.mxu0 %v2587
          %2589 = vmatprep.subr.mxu0 0.0
          %v2590 = vand.u32 %v2208, 4294901760
          %2591 = vmatpush1.msra.mxu0 %v2590
          %2592 = vmatprep.subr.mxu0 0.0
          %v2593 = vand.u32 %v2209, 4294901760
          %2594 = vmatpush1.msra.mxu0 %v2593
          %2595 = vmatprep.subr.mxu0 0.0
          %v2596 = vand.u32 %v2210, 4294901760
          %2597 = vmatpush1.msra.mxu0 %v2596
          %2598 = vmatprep.subr.mxu0 0.0
          %v2599 = vand.u32 %v2211, 4294901760
          %2600 = vmatpush1.msra.mxu0 %v2599
          %2601 = vmatprep.subr.mxu0 0.0
          %v2602 = vand.u32 %v2212, 4294901760
          %2603 = vmatpush1.msra.mxu0 %v2602
          %2604 = vmatprep.subr.mxu0 0.0
          %v2605 = vand.u32 %v2213, 4294901760
          %2606 = vmatpush1.msra.mxu0 %v2605
          %2607 = vmatprep.subr.mxu0 0.0
          %v2608 = vand.u32 %v2214, 4294901760
          %2609 = vmatpush1.msra.mxu0 %v2608
          %2610 = vmatprep.subr.mxu0 0.0
          %v2611 = vand.u32 %v2215, 4294901760
          %2612 = vmatpush1.msra.mxu0 %v2611
          %2613 = vmatprep.subr.mxu0 0.0
          %v2614 = vand.u32 %v2216, 4294901760
          %2615 = vmatpush1.msra.mxu0 %v2614
          %2616 = vmatprep.subr.mxu0 0.0
          %v2617 = vand.u32 %v2217, 4294901760
          %2618 = vmatpush1.msra.mxu0 %v2617
          %2619 = vmatprep.subr.mxu0 0.0
          %2620 = vmatpush1.msra.mxu0 0.0
          %2621 = vmatprep.subr.mxu0 0.0
          %2622 = vmatpush1.msra.mxu0 0.0
          %2623 = vmatprep.subr.mxu0 0.0
          %2624 = vmatpush1.msra.mxu0 0.0
          %2625 = vmatprep.subr.mxu0 0.0
          %2626 = vmatpush1.msra.mxu0 0.0
          %2627 = vmatprep.subr.mxu0 0.0
          %2628 = vmatpush1.msra.mxu0 0.0
          %2629 = vmatprep.subr.mxu0 0.0
          %2630 = vmatpush1.msra.mxu0 0.0
          %2631 = vmatprep.subr.mxu0 0.0
          %2632 = vmatpush1.msra.mxu0 0.0
          %2633 = vmatprep.subr.mxu0 0.0
          %2634 = vmatpush1.msra.mxu0 0.0
          %2635 = vmatprep.subr.mxu0 0.0
          %2636 = vmatpush1.msra.mxu0 0.0
          %2637 = vmatprep.subr.mxu0 0.0
          %2638 = vmatpush1.msra.mxu0 0.0
          %2639 = vmatprep.subr.mxu0 0.0
          %2640 = vmatpush1.msra.mxu0 0.0
          %2641 = vmatprep.subr.mxu0 0.0
          %2642 = vmatpush1.msra.mxu0 0.0
          %2643 = vmatprep.subr.mxu0 0.0
          %2644 = vmatpush1.msra.mxu0 0.0
          %2645 = vmatprep.subr.mxu0 0.0
          %2646 = vmatpush1.msra.mxu0 0.0
          %2647 = vmatprep.subr.mxu0 0.0
          %2648 = vmatpush1.msra.mxu0 0.0
          %2649 = vmatprep.subr.mxu0 0.0
          %2650 = vmatpush1.msra.mxu0 0.0
          %2651 = vmatprep.mubr.f32.mxu0 0.0
          %v2652 = vand.u32 %v392, 4294901760
          %v2653 = vsub.f32 %v392, %v2652
          %v2654 = vand.u32 %v2653, 4294901760
          %2655 = vmatmul.mubr.f32.gmra.mrb[0].mxu0 %v2654
          %v2656 = vpop.f32.mrb[0].mxu0
          %v2657 = vadd.f32 %v2568, %v2656
          %v2658 = vpop.f32.mrb[0].mxu0
          %2659 = vdwg.mxu0
          %2660 = vmatprep.subr.mxu0 0.0
          %v2661 = vand.u32 %v2202, 4294901760
          %v2662 = vsub.f32 %v2202, %v2661
          %v2663 = vand.u32 %v2662, 4294901760
          %2664 = vmatpush1.msra.mxu0 %v2663
          %2665 = vmatprep.subr.mxu0 0.0
          %v2666 = vand.u32 %v2203, 4294901760
          %v2667 = vsub.f32 %v2203, %v2666
          %v2668 = vand.u32 %v2667, 4294901760
          %2669 = vmatpush1.msra.mxu0 %v2668
          %2670 = vmatprep.subr.mxu0 0.0
          %v2671 = vand.u32 %v2204, 4294901760
          %v2672 = vsub.f32 %v2204, %v2671
          %v2673 = vand.u32 %v2672, 4294901760
          %2674 = vmatpush1.msra.mxu0 %v2673
          %2675 = vmatprep.subr.mxu0 0.0
          %v2676 = vand.u32 %v2205, 4294901760
          %v2677 = vsub.f32 %v2205, %v2676
          %v2678 = vand.u32 %v2677, 4294901760
          %2679 = vmatpush1.msra.mxu0 %v2678
          %2680 = vmatprep.subr.mxu0 0.0
          %v2681 = vand.u32 %v2206, 4294901760
          %v2682 = vsub.f32 %v2206, %v2681
          %v2683 = vand.u32 %v2682, 4294901760
          %2684 = vmatpush1.msra.mxu0 %v2683
          %2685 = vmatprep.subr.mxu0 0.0
          %v2686 = vand.u32 %v2207, 4294901760
          %v2687 = vsub.f32 %v2207, %v2686
          %v2688 = vand.u32 %v2687, 4294901760
          %2689 = vmatpush1.msra.mxu0 %v2688
          %2690 = vmatprep.subr.mxu0 0.0
          %v2691 = vand.u32 %v2208, 4294901760
          %v2692 = vsub.f32 %v2208, %v2691
          %v2693 = vand.u32 %v2692, 4294901760
          %2694 = vmatpush1.msra.mxu0 %v2693
          %2695 = vmatprep.subr.mxu0 0.0
          %v2696 = vand.u32 %v2209, 4294901760
          %v2697 = vsub.f32 %v2209, %v2696
          %v2698 = vand.u32 %v2697, 4294901760
          %2699 = vmatpush1.msra.mxu0 %v2698
          %2700 = vmatprep.subr.mxu0 0.0
          %v2701 = vand.u32 %v2210, 4294901760
          %v2702 = vsub.f32 %v2210, %v2701
          %v2703 = vand.u32 %v2702, 4294901760
          %2704 = vmatpush1.msra.mxu0 %v2703
          %2705 = vmatprep.subr.mxu0 0.0
          %v2706 = vand.u32 %v2211, 4294901760
          %v2707 = vsub.f32 %v2211, %v2706
          %v2708 = vand.u32 %v2707, 4294901760
          %2709 = vmatpush1.msra.mxu0 %v2708
          %2710 = vmatprep.subr.mxu0 0.0
          %v2711 = vand.u32 %v2212, 4294901760
          %v2712 = vsub.f32 %v2212, %v2711
          %v2713 = vand.u32 %v2712, 4294901760
          %2714 = vmatpush1.msra.mxu0 %v2713
          %2715 = vmatprep.subr.mxu0 0.0
          %v2716 = vand.u32 %v2213, 4294901760
          %v2717 = vsub.f32 %v2213, %v2716
          %v2718 = vand.u32 %v2717, 4294901760
          %2719 = vmatpush1.msra.mxu0 %v2718
          %2720 = vmatprep.subr.mxu0 0.0
          %v2721 = vand.u32 %v2214, 4294901760
          %v2722 = vsub.f32 %v2214, %v2721
          %v2723 = vand.u32 %v2722, 4294901760
          %2724 = vmatpush1.msra.mxu0 %v2723
          %2725 = vmatprep.subr.mxu0 0.0
          %v2726 = vand.u32 %v2215, 4294901760
          %v2727 = vsub.f32 %v2215, %v2726
          %v2728 = vand.u32 %v2727, 4294901760
          %2729 = vmatpush1.msra.mxu0 %v2728
          %2730 = vmatprep.subr.mxu0 0.0
          %v2731 = vand.u32 %v2216, 4294901760
          %v2732 = vsub.f32 %v2216, %v2731
          %v2733 = vand.u32 %v2732, 4294901760
          %2734 = vmatpush1.msra.mxu0 %v2733
          %2735 = vmatprep.subr.mxu0 0.0
          %v2736 = vand.u32 %v2217, 4294901760
          %v2737 = vsub.f32 %v2217, %v2736
          %v2738 = vand.u32 %v2737, 4294901760
          %2739 = vmatpush1.msra.mxu0 %v2738
          %2740 = vmatprep.subr.mxu0 0.0
          %2741 = vmatpush1.msra.mxu0 0.0
          %2742 = vmatprep.subr.mxu0 0.0
          %2743 = vmatpush1.msra.mxu0 0.0
          %2744 = vmatprep.subr.mxu0 0.0
          %2745 = vmatpush1.msra.mxu0 0.0
          %2746 = vmatprep.subr.mxu0 0.0
          %2747 = vmatpush1.msra.mxu0 0.0
          %2748 = vmatprep.subr.mxu0 0.0
          %2749 = vmatpush1.msra.mxu0 0.0
          %2750 = vmatprep.subr.mxu0 0.0
          %2751 = vmatpush1.msra.mxu0 0.0
          %2752 = vmatprep.subr.mxu0 0.0
          %2753 = vmatpush1.msra.mxu0 0.0
          %2754 = vmatprep.subr.mxu0 0.0
          %2755 = vmatpush1.msra.mxu0 0.0
          %2756 = vmatprep.subr.mxu0 0.0
          %2757 = vmatpush1.msra.mxu0 0.0
          %2758 = vmatprep.subr.mxu0 0.0
          %2759 = vmatpush1.msra.mxu0 0.0
          %2760 = vmatprep.subr.mxu0 0.0
          %2761 = vmatpush1.msra.mxu0 0.0
          %2762 = vmatprep.subr.mxu0 0.0
          %2763 = vmatpush1.msra.mxu0 0.0
          %2764 = vmatprep.subr.mxu0 0.0
          %2765 = vmatpush1.msra.mxu0 0.0
          %2766 = vmatprep.subr.mxu0 0.0
          %2767 = vmatpush1.msra.mxu0 0.0
          %2768 = vmatprep.subr.mxu0 0.0
          %2769 = vmatpush1.msra.mxu0 0.0
          %2770 = vmatprep.subr.mxu0 0.0
          %2771 = vmatpush1.msra.mxu0 0.0
          %2772 = vmatprep.mubr.f32.mxu0 0.0
          %v2773 = vand.u32 %v392, 4294901760
          %2774 = vmatmul.mubr.f32.gmra.mrb[0].mxu0 %v2773
          %v2775 = vpop.f32.mrb[0].mxu0
          %v2776 = vadd.f32 %v2657, %v2775
          %v2777 = vpop.f32.mrb[0].mxu0
          %2778 = vdwg.mxu0
          %2779 = vmatprep.subr.mxu0 0.0
          %v2780 = vand.u32 %v2202, 4294901760
          %2781 = vmatpush1.msra.mxu0 %v2780
          %2782 = vmatprep.subr.mxu0 0.0
          %v2783 = vand.u32 %v2203, 4294901760
          %2784 = vmatpush1.msra.mxu0 %v2783
          %2785 = vmatprep.subr.mxu0 0.0
          %v2786 = vand.u32 %v2204, 4294901760
          %2787 = vmatpush1.msra.mxu0 %v2786
          %2788 = vmatprep.subr.mxu0 0.0
          %v2789 = vand.u32 %v2205, 4294901760
          %2790 = vmatpush1.msra.mxu0 %v2789
          %2791 = vmatprep.subr.mxu0 0.0
          %v2792 = vand.u32 %v2206, 4294901760
          %2793 = vmatpush1.msra.mxu0 %v2792
          %2794 = vmatprep.subr.mxu0 0.0
          %v2795 = vand.u32 %v2207, 4294901760
          %2796 = vmatpush1.msra.mxu0 %v2795
          %2797 = vmatprep.subr.mxu0 0.0
          %v2798 = vand.u32 %v2208, 4294901760
          %2799 = vmatpush1.msra.mxu0 %v2798
          %2800 = vmatprep.subr.mxu0 0.0
          %v2801 = vand.u32 %v2209, 4294901760
          %2802 = vmatpush1.msra.mxu0 %v2801
          %2803 = vmatprep.subr.mxu0 0.0
          %v2804 = vand.u32 %v2210, 4294901760
          %2805 = vmatpush1.msra.mxu0 %v2804
          %2806 = vmatprep.subr.mxu0 0.0
          %v2807 = vand.u32 %v2211, 4294901760
          %2808 = vmatpush1.msra.mxu0 %v2807
          %2809 = vmatprep.subr.mxu0 0.0
          %v2810 = vand.u32 %v2212, 4294901760
          %2811 = vmatpush1.msra.mxu0 %v2810
          %2812 = vmatprep.subr.mxu0 0.0
          %v2813 = vand.u32 %v2213, 4294901760
          %2814 = vmatpush1.msra.mxu0 %v2813
          %2815 = vmatprep.subr.mxu0 0.0
          %v2816 = vand.u32 %v2214, 4294901760
          %2817 = vmatpush1.msra.mxu0 %v2816
          %2818 = vmatprep.subr.mxu0 0.0
          %v2819 = vand.u32 %v2215, 4294901760
          %2820 = vmatpush1.msra.mxu0 %v2819
          %2821 = vmatprep.subr.mxu0 0.0
          %v2822 = vand.u32 %v2216, 4294901760
          %2823 = vmatpush1.msra.mxu0 %v2822
          %2824 = vmatprep.subr.mxu0 0.0
          %v2825 = vand.u32 %v2217, 4294901760
          %2826 = vmatpush1.msra.mxu0 %v2825
          %2827 = vmatprep.subr.mxu0 0.0
          %2828 = vmatpush1.msra.mxu0 0.0
          %2829 = vmatprep.subr.mxu0 0.0
          %2830 = vmatpush1.msra.mxu0 0.0
          %2831 = vmatprep.subr.mxu0 0.0
          %2832 = vmatpush1.msra.mxu0 0.0
          %2833 = vmatprep.subr.mxu0 0.0
          %2834 = vmatpush1.msra.mxu0 0.0
          %2835 = vmatprep.subr.mxu0 0.0
          %2836 = vmatpush1.msra.mxu0 0.0
          %2837 = vmatprep.subr.mxu0 0.0
          %2838 = vmatpush1.msra.mxu0 0.0
          %2839 = vmatprep.subr.mxu0 0.0
          %2840 = vmatpush1.msra.mxu0 0.0
          %2841 = vmatprep.subr.mxu0 0.0
          %2842 = vmatpush1.msra.mxu0 0.0
          %2843 = vmatprep.subr.mxu0 0.0
          %2844 = vmatpush1.msra.mxu0 0.0
          %2845 = vmatprep.subr.mxu0 0.0
          %2846 = vmatpush1.msra.mxu0 0.0
          %2847 = vmatprep.subr.mxu0 0.0
          %2848 = vmatpush1.msra.mxu0 0.0
          %2849 = vmatprep.subr.mxu0 0.0
          %2850 = vmatpush1.msra.mxu0 0.0
          %2851 = vmatprep.subr.mxu0 0.0
          %2852 = vmatpush1.msra.mxu0 0.0
          %2853 = vmatprep.subr.mxu0 0.0
          %2854 = vmatpush1.msra.mxu0 0.0
          %2855 = vmatprep.subr.mxu0 0.0
          %2856 = vmatpush1.msra.mxu0 0.0
          %2857 = vmatprep.subr.mxu0 0.0
          %2858 = vmatpush1.msra.mxu0 0.0
          %2859 = vmatprep.mubr.f32.mxu0 0.0
          %v2860 = vand.u32 %v392, 4294901760
          %2861 = vmatmul.mubr.f32.gmra.mrb[0].mxu0 %v2860
          %v2862 = vpop.f32.mrb[0].mxu0
          %v2863 = vadd.f32 %v2776, %v2862
          %v2864 = vpop.f32.mrb[0].mxu0
          %2865 = vdwg.mxu0
          %2866 = vmax.xlane.f32.xlu0 %v2863
          %v2867 = vpop.xlane.xlu0 %2866
          %v2868 = vsub.f32 %v2863, %v2867
          %v2869 = vmul.f32 %v2868, 1.442695
          %v2870 = vpow.pop %v2869
          %2871 = vadd.xlane.f32.xlu0 %v2870
          %v2872 = vpop.xlane.xlu0 %2871
          %v2873 = vrcp.pop %v2872
          %v2874 = vmul.f32 %v2870, %v2873
          %v2875 = vld [vmem:[%s379] sm:$0xff]
          %v2876 = vld [vmem:[%s6] sm:$0x1]
          %v2878 = vlaneseq
          %v2879 = vshrl.u32 %v2878, 7
          %v2880 = vsub.s32 0, %v2879
          %v2881 = vrot.slane %v2876, %v2880
          %v2883 = vadd.f32 %v2875, %v2881
          %v2884 = vmul.f32 %v2874, %v2883
          %2885 = vst [vmem:[%s379] sm:$0xff] %v2884
        $region72: #{tpu_custom_call.1} parent=47 // pred_fallthru
          _
        %s2886 = sand.u32 %s213, 1
        %s2887 = scalar_lea.sflag [#allocation4], %s2886
        %s2888 = sand.u32 %s213, 1
        %s2889 = smul.addr %s2888, 8
        %s2890 = scalar_lea.vmem [#allocation10], %s2889
        // Predicated region
        $region73: #{tpu_custom_call.1} parent=47 // pred_check
          %p2891 = pneg %p223
        $region74: #{tpu_custom_call.1} parent=47 // pred_check_branch
          %2893 = sbr.rel (%p2891) target = $region76
        $region75: #{tpu_custom_call.1} parent=47 // pred_region
          %s2895 = ssub.s32 128, 128
          %2896 = vsyncadd %s2887, %s2895
          %s2897 = smul.addr %s30, 128
          %s2898 = scalar_lea.hbm %s7, %s2897
          %s2900 = sshll.u32 %s2890, 4
          %s2901 = int_to_ptr.vmem [resolvable:$true] %s2900
          %2903 = dma.vmem_to_hbm [thread:$0]  %s2901, 128, %s2898, %s2887
        $region76: #{tpu_custom_call.1} parent=47 // pred_fallthru
          _
      $region48: #{tpu_custom_call.1} parent=5 // pred_fallthru
        _
      %p2904 = scmp.le.s32.totalorder 2, %s21
      // Predicated region
      $region77: #{tpu_custom_call.1} parent=5 // pred_check
        %p2905 = pneg %p2904
      $region78: #{tpu_custom_call.1} parent=5 // pred_check_branch
        %2907 = sbr.rel (%p2905) target = $region80
      $region79: #{tpu_custom_call.1} parent=5 // pred_region
        %s2908 = ssub.s32 %s21, 2
        // Predicated region
        $region81: #{tpu_custom_call.1} parent=79 // pred_check
          %p2909 = pneg %p229
        $region82: #{tpu_custom_call.1} parent=79 // pred_check_branch
          %2911 = sbr.rel (%p2909) target = $region84
        $region83: #{tpu_custom_call.1} parent=79 // pred_region
          %s2912 = sand.u32 %s214, 1
          %s2913 = scalar_lea.sflag [#allocation4], %s2912
          %s2914 = sand.u32 %s214, 1
          %s2915 = smul.addr %s2914, 8
          %s2916 = scalar_lea.vmem [#allocation10], %s2915
          %2917 = dma.done %s2913, 128
        $region84: #{tpu_custom_call.1} parent=79 // pred_fallthru
          _
      $region80: #{tpu_custom_call.1} parent=5 // pred_fallthru
        _
    $region6: #{tpu_custom_call.1} parent=1 // loop_footer
      %s25 = sadd.s32 1, %s21
    $region7: #{tpu_custom_call.1} parent=1 // loop_footer_branch
      %20 = sbr.rel target = $region3
    $region8: #{tpu_custom_call.1} parent=1 // loop_exit
      _
    %2918 = vsyncpa [#allocation3], 1
    %s2919 = scalar_lea.sflag [#allocation3], 1
    %2920 = vsyncpa %s2919, 1
    %2921 = vsyncpa [#allocation6], 1
    %2922 = vsyncpa [#allocation9], 1
    %2923 = vsyncpa [#allocation4], 1
    %s2924 = scalar_lea.sflag [#allocation4], 1
    %2925 = vsyncpa %s2924, 1

</llo_original>
